<compile_context>
chip_gen: v7x
topology: tpu7x:2x2x1
jax: 0.10.0
libtpu: 0.0.40
codegen_flags: <defaults>
</compile_context>

<pallas_src>
import functools

import jax
import jax.numpy as jnp
from jax.experimental import pallas as pl
from jax.experimental.pallas import tpu as pltpu


def _round_up(x, m):
    return (x + m - 1) // m * m


# ----------------------------------------------------------------------------
# Truncated inverse real-DFT basis matching jnp.fft.irfft(..., norm='ortho')
# for a spectrum that is zero outside the retained modes.
# ----------------------------------------------------------------------------
def _idft_basis(mode_lo, mode_hi, L):
    k = jnp.arange(mode_lo, mode_hi)                         # (K,) retained bins
    n = jnp.arange(L)                                        # (L,) output positions
    theta = 2.0 * jnp.pi * k[:, None].astype(jnp.float32) * n[None, :] / L
    is_edge = (k == 0)
    if L % 2 == 0:
        is_edge = is_edge | (k == L // 2)                    # DC / Nyquist: not doubled
    mult = jnp.where(is_edge, 1.0, 2.0).astype(jnp.float32)[:, None]
    scale = 1.0 / (L ** 0.5)                                 # 'ortho' norm
    br = mult * jnp.cos(theta) * scale                       # (K, L) coeff of Re(X[k])
    bi = jnp.where(is_edge[:, None], 0.0,
                   -mult * jnp.sin(theta) * scale)           # (K, L) coeff of Im(X[k])
    return br, bi


def _make_combined_weight(w_cplx, modes, L):
    """Fold per-mode complex channel mixing + truncated iDFT into one real matrix.

    w_cplx: (I, O, K) complex64.  Returns (2*K*I, L*O) float32 with
    row order (re/im, k, i) and column order (n, o)."""
    I, O, K = w_cplx.shape
    br, bi = _idft_basis(modes[0], modes[1], L)              # (K, L)
    wr = jnp.real(w_cplx).astype(jnp.float32)                # (I, O, K)
    wi = jnp.imag(w_cplx).astype(jnp.float32)
    # contribution of Re(f):  wr*Br + wi*Bi ;  of Im(f): wr*Bi - wi*Br
    re_rows = (jnp.einsum('iok,kn->kino', wr, br)
               + jnp.einsum('iok,kn->kino', wi, bi))         # (K, I, L, O)
    im_rows = (jnp.einsum('iok,kn->kino', wr, bi)
               - jnp.einsum('iok,kn->kino', wi, br))
    wc = jnp.stack([re_rows, im_rows], axis=0)               # (2, K, I, L, O)
    return wc.reshape(2 * K * I, L * O)


# ----------------------------------------------------------------------------
# Pallas kernel 1: spectral branch = (mode-mix + inverse DFT) as one matmul.
#   out[p, (n,o)] = sum_{(re/im, k, i)} F[p, (re/im, k, i)] * Wc[(re/im, k, i), (n, o)]
# ----------------------------------------------------------------------------
def _spectral_kernel(f_ref, w_ref, o_ref):
    # f32 operands with HIGHEST precision: this small matmul seeds everything
    # downstream, so keep it accurate (the big streaming MLP uses bf16 instead).
    o_ref[...] = jnp.dot(f_ref[...], w_ref[...],
                         preferred_element_type=jnp.float32,
                         precision=jax.lax.Precision.HIGHEST)


def spectral_matmul_pallas(f_packed, w_comb, *, row_tile=512):
    """f_packed: (P, 2*K*I) f32.  w_comb: (2*K*I, L*O) f32 -> (P, L*O) f32."""
    P, ctr = f_packed.shape
    cout = w_comb.shape[1]
    tp = min(row_tile, _round_up(P, 8))                      # multiple of 8 sublanes
    p_pad = _round_up(P, tp)
    if p_pad != P:                                           # pad rows (zeros -> zero out)
        f_packed = jnp.pad(f_packed, ((0, p_pad - P), (0, 0)))
    out = pl.pallas_call(
        _spectral_kernel,
        grid=(p_pad // tp,),
        in_specs=[pl.BlockSpec((tp, ctr), lambda i: (i, 0)),
                  pl.BlockSpec((ctr, cout), lambda i: (0, 0))],   # weight VMEM-resident
        out_shape=jax.ShapeDtypeStruct((p_pad, cout), jnp.float32),
        out_specs=pl.BlockSpec((tp, cout), lambda i: (i, 0)),
        compiler_params=pltpu.CompilerParams(
            dimension_semantics=("parallel",),
            vmem_limit_bytes=64 * 1024 * 1024),
    )(f_packed, w_comb)
    return out[:P]


# ----------------------------------------------------------------------------
# Pallas kernel 2: fused (xx + xy) add + backcast FeedForward
#                  (Linear -> ReLU -> Linear), bf16 MXU operands, f32 accumulate.
#                  Dropout = identity in eval mode.
# ----------------------------------------------------------------------------
def _mlp_fused_kernel(xy_ref, xx_ref, w0_ref, b0_ref, w1_ref, b1_ref, o_ref):
    x = xy_ref[...] + xx_ref[...]                            # fused add, f32 on VPU
    h = jnp.dot(x.astype(jnp.bfloat16), w0_ref[...],
                preferred_element_type=jnp.float32) + b0_ref[...]
    h = jnp.maximum(h, 0.0)
    o_ref[...] = jnp.dot(h.astype(jnp.bfloat16), w1_ref[...],
                         preferred_element_type=jnp.float32) + b1_ref[...]


def mlp_fused_pallas(xy_flat, xx_flat, w0, b0, w1, b1, *, row_tile=512):
    T, C = xy_flat.shape
    H = w0.shape[1]
    tp = min(row_tile, _round_up(T, 8))
    t_pad = _round_up(T, tp)
    if t_pad != T:                                           # handles T % tile != 0
        xy_flat = jnp.pad(xy_flat, ((0, t_pad - T), (0, 0)))
        xx_flat = jnp.pad(xx_flat, ((0, t_pad - T), (0, 0)))
    w0b = w0.astype(jnp.bfloat16)                            # cast once, halve DMA
    w1b = w1.astype(jnp.bfloat16)
    out = pl.pallas_call(
        _mlp_fused_kernel,
        grid=(t_pad // tp,),
        in_specs=[pl.BlockSpec((tp, C), lambda i: (i, 0)),
                  pl.BlockSpec((tp, C), lambda i: (i, 0)),
                  pl.BlockSpec((C, H), lambda i: (0, 0)),
                  pl.BlockSpec((1, H), lambda i: (0, 0)),
                  pl.BlockSpec((H, C), lambda i: (0, 0)),
                  pl.BlockSpec((1, C), lambda i: (0, 0))],
        out_shape=jax.ShapeDtypeStruct((t_pad, C), jnp.float32),
        out_specs=pl.BlockSpec((tp, C), lambda i: (i, 0)),
        compiler_params=pltpu.CompilerParams(
            dimension_semantics=("parallel",),
            vmem_limit_bytes=64 * 1024 * 1024),
    )(xy_flat, xx_flat, w0b, b0.reshape(1, H), w1b, b1.reshape(1, C))
    return out[:T]


# ----------------------------------------------------------------------------
# Forward pass (mirrors SpectralConv2d.forward / forward_fourier, mode='full',
# use_fork=False: returns the backcast output b; forecast f would be None).
# ----------------------------------------------------------------------------
@functools.partial(jax.jit, static_argnames=("modes_x", "modes_y"))
def spectral_conv2d_forward(x, params, modes_x, modes_y):
    """x: (B, M, N, C) float32.  Returns the backcast output (B, M, N, C)."""
    wy_cplx, wx_cplx, w0, b0, w1, b1 = params
    B, M, N, I = x.shape
    O = wy_cplx.shape[1]
    ky = modes_y[1] - modes_y[0]
    kx = modes_x[1] - modes_x[0]

    # --- y branch: rfft along N, then (mode-mix + truncated iDFT) matmul ---
    fy = jnp.fft.rfft(x, axis=2, norm='ortho')               # (B, M, N//2+1, I)
    fy_m = fy[:, :, modes_y[0]:modes_y[1], :]                # (B, M, Ky, I)
    f_pack_y = jnp.stack([jnp.real(fy_m), jnp.imag(fy_m)], axis=2)   # (B, M, 2, Ky, I)
    f_pack_y = f_pack_y.reshape(B * M, 2 * ky * I)           # contiguous, no transpose
    wc_y = _make_combined_weight(wy_cplx, modes_y, N)        # (2*Ky*I, N*O)
    xy = spectral_matmul_pallas(f_pack_y, wc_y).reshape(B, M, N, O)

    # --- x branch: rfft along M, then (mode-mix + truncated iDFT) matmul ---
    fx = jnp.fft.rfft(x, axis=1, norm='ortho')               # (B, M//2+1, N, I)
    fx_m = fx[:, modes_x[0]:modes_x[1], :, :]                # (B, Kx, N, I)  (small)
    fx_m = jnp.transpose(fx_m, (0, 2, 1, 3))                 # (B, N, Kx, I)  (small)
    f_pack_x = jnp.stack([jnp.real(fx_m), jnp.imag(fx_m)], axis=2)   # (B, N, 2, Kx, I)
    f_pack_x = f_pack_x.reshape(B * N, 2 * kx * I)
    wc_x = _make_combined_weight(wx_cplx, modes_x, M)        # (2*Kx*I, M*O)
    gx = spectral_matmul_pallas(f_pack_x, wc_x)              # (B*N, M*O)
    xx = jnp.transpose(gx.reshape(B, N, M, O), (0, 2, 1, 3))  # (B, M, N, O)
    # TODO(synk): the x-branch (B,N,M,O)->(B,M,N,O) transpose could be folded into
    # the fused MLP kernel with a strided BlockSpec + in-kernel transpose.

    # --- fused (xx + xy) add + backcast FeedForward MLP ---
    out = mlp_fused_pallas(xy.reshape(B * M * N, O),
                           xx.reshape(B * M * N, O), w0, b0, w1, b1)
    return out.reshape(B, M, N, O)
    # TODO(synk): use_fork / forecast_ff path omitted (use_fork=False default).


# ----------------------------------------------------------------------------
# Pure-JAX reference (faithful translation of the torch module, f32/HIGHEST).
# ----------------------------------------------------------------------------
def reference_forward(x, params, modes_x, modes_y):
    wy, wx, w0, b0, w1, b1 = params
    xp = jnp.transpose(x, (0, 3, 1, 2))
    B, I, M, N = xp.shape
    O = wy.shape[1]
    fy = jnp.fft.rfft(xp, axis=-1, norm='ortho')
    out_ft = jnp.zeros((B, O, M, N // 2 + 1), jnp.complex64)
    out_ft = out_ft.at[:, :, :, modes_y[0]:modes_y[1]].set(
        jnp.einsum('bixy,ioy->boxy', fy[:, :, :, modes_y[0]:modes_y[1]], wy,
                   precision=jax.lax.Precision.HIGHEST))
    xy = jnp.fft.irfft(out_ft, n=N, axis=-1, norm='ortho')
    fx = jnp.fft.rfft(xp, axis=-2, norm='ortho')
    out_ft2 = jnp.zeros((B, O, M // 2 + 1, N), jnp.complex64)
    out_ft2 = out_ft2.at[:, :, modes_x[0]:modes_x[1], :].set(
        jnp.einsum('bixy,iox->boxy', fx[:, :, modes_x[0]:modes_x[1], :], wx,
                   precision=jax.lax.Precision.HIGHEST))
    xx = jnp.fft.irfft(out_ft2, n=M, axis=-2, norm='ortho')
    xf = jnp.transpose(xx + xy, (0, 2, 3, 1))
    h = jnp.maximum(jnp.einsum('...i,ih->...h', xf, w0,
                               precision=jax.lax.Precision.HIGHEST) + b0, 0.0)
    return jnp.einsum('...h,ho->...o', h, w1,
                      precision=jax.lax.Precision.HIGHEST) + b1


# ----------------------------------------------------------------------------
# Deterministic parameter init (shapes per SpectralConv2d.__init__)
# ----------------------------------------------------------------------------
def init_params(key, in_dim, out_dim, modes_x, modes_y, factor=4):
    kx, ky, k0, kb0, k1, kb1 = jax.random.split(key, 6)
    n_mx = modes_x[1] - modes_x[0]
    n_my = modes_y[1] - modes_y[0]

    def xavier_normal(k, shape):
        recep = 1
        for d in shape[2:]:
            recep *= d
        fan_in, fan_out = shape[1] * recep, shape[0] * recep
        std = (2.0 / (fan_in + fan_out)) ** 0.5
        return std * jax.random.normal(k, shape, jnp.float32)

    # fourier_weight_{x,y}: (in_dim, out_dim, n_modes, 2) -> complex (in, out, modes)
    wx_raw = xavier_normal(kx, (in_dim, out_dim, n_mx, 2))
    wy_raw = xavier_normal(ky, (in_dim, out_dim, n_my, 2))
    wx_cplx = wx_raw[..., 0] + 1j * wx_raw[..., 1]
    wy_cplx = wy_raw[..., 0] + 1j * wy_raw[..., 1]

    hidden = out_dim * factor
    # backcast_ff: Linear(out_dim, hidden) -> ReLU -> Linear(hidden, out_dim)
    w0 = (1.0 / out_dim ** 0.5) * jax.random.uniform(k0, (out_dim, hidden),
                                                     jnp.float32, -1.0, 1.0)
    b0 = (1.0 / out_dim ** 0.5) * jax.random.uniform(kb0, (hidden,),
                                                     jnp.float32, -1.0, 1.0)
    w1 = (1.0 / hidden ** 0.5) * jax.random.uniform(k1, (hidden, out_dim),
                                                    jnp.float32, -1.0, 1.0)
    b1 = (1.0 / hidden ** 0.5) * jax.random.uniform(kb1, (out_dim,),
                                                    jnp.float32, -1.0, 1.0)
    return (wy_cplx, wx_cplx, w0, b0, w1, b1)


if __name__ == "__main__":
    B, M, N, C = 2, 16, 16, 4          # in_dim = out_dim = 4
    modes_x = (0, 8)
    modes_y = (0, 8)

    key = jax.random.PRNGKey(0)
    kp, kxk = jax.random.split(key)
    params = init_params(kp, C, C, modes_x, modes_y, factor=4)
    x = jax.random.normal(kxk, (B, M, N, C), jnp.float32)

    out = spectral_conv2d_forward(x, params, modes_x, modes_y)
    out = jax.block_until_ready(out)

    ref = reference_forward(x, params, modes_x, modes_y)
    assert out.shape == (B, M, N, C)
    # Tolerance accounts for bf16 MXU operands in the MLP kernel (f32 accumulate)
    # vs. the HIGHEST-precision reference; spectral path is full f32.
    err = jnp.max(jnp.abs(out - ref))
    assert jnp.allclose(out, ref, rtol=2e-2, atol=2e-2), f"max abs err {err}"

    print("KERNEL_OK")
</pallas_src>

<mosaic_0001>
module attributes {stable_mosaic.version = 11 : i64} {
  func.func @_spectral_kernel(%arg0: i32, %arg1: memref<32x64xf32, #tpu.memory_space<vmem>>, %arg2: memref<64x64xf32, #tpu.memory_space<vmem>>, %arg3: memref<32x64xf32, #tpu.memory_space<vmem>>) attributes {dimension_semantics = [#tpu.dimension_semantics<parallel>], iteration_bounds = array<i64: 1>, scalar_prefetch = 0 : i64, scratch_operands = 0 : i64, tpu.core_type = #tpu.core_type<tc>, window_params = [{transform_indices = @transform_0, window_bounds = array<i64: 32, 64>}, {pipeline_mode = #tpu.pipeline_mode<synchronous>, transform_indices = @transform_1, window_bounds = array<i64: 64, 64>}, {transform_indices = @transform_2, window_bounds = array<i64: 32, 64>}]} {
    %c0 = arith.constant 0 : index
    %c0_0 = arith.constant 0 : index
    %0 = vector.load %arg1[%c0, %c0_0] : memref<32x64xf32, #tpu.memory_space<vmem>>, vector<32x64xf32>
    %c0_1 = arith.constant 0 : index
    %c0_2 = arith.constant 0 : index
    %1 = vector.load %arg2[%c0_1, %c0_2] : memref<64x64xf32, #tpu.memory_space<vmem>>, vector<64x64xf32>
    %cst = arith.constant dense<0.000000e+00> : vector<32x64xf32>
    %2 = tpu.matmul %0, %1, %cst {dimension_numbers = #tpu.dot_dimension_numbers<[1], [0], [0], [1], [0, 0, 1, 1], [], []>, precision = #tpu.contract_precision<fp32>} : vector<32x64xf32>, vector<64x64xf32>, vector<32x64xf32> -> vector<32x64xf32>
    %c0_3 = arith.constant 0 : index
    %c0_4 = arith.constant 0 : index
    %3 = vector.load %arg3[%c0_3, %c0_4] : memref<32x64xf32, #tpu.memory_space<vmem>>, vector<32x64xf32>
    tpu.vector_store %arg3[%c0_3, %c0_4], %2 {strides = array<i32>} : memref<32x64xf32, #tpu.memory_space<vmem>>, vector<32x64xf32>,
    return
  }
  func.func @transform_0(%arg0: i32) -> (i32, i32) {
    %c0_i32 = arith.constant 0 : i32
    %c0_i32_0 = arith.constant 0 : i32
    return %arg0, %c0_i32 : i32, i32
  }
  func.func @transform_1(%arg0: i32) -> (i32, i32) {
    %c0_i32 = arith.constant 0 : i32
    %c0_i32_0 = arith.constant 0 : i32
    %c0_i32_1 = arith.constant 0 : i32
    return %c0_i32, %c0_i32_0 : i32, i32
  }
  func.func @transform_2(%arg0: i32) -> (i32, i32) {
    %c0_i32 = arith.constant 0 : i32
    %c0_i32_0 = arith.constant 0 : i32
    return %arg0, %c0_i32 : i32, i32
  }
}

module attributes {stable_mosaic.version = 11 : i64} {
  func.func @_mlp_fused_kernel(%arg0: i32, %arg1: memref<512x4xf32, #tpu.memory_space<vmem>>, %arg2: memref<512x4xf32, #tpu.memory_space<vmem>>, %arg3: memref<4x16xbf16, #tpu.memory_space<vmem>>, %arg4: memref<1x16xf32, #tpu.memory_space<vmem>>, %arg5: memref<16x4xbf16, #tpu.memory_space<vmem>>, %arg6: memref<1x4xf32, #tpu.memory_space<vmem>>, %arg7: memref<512x4xf32, #tpu.memory_space<vmem>>) attributes {dimension_semantics = [#tpu.dimension_semantics<parallel>], iteration_bounds = array<i64: 1>, scalar_prefetch = 0 : i64, scratch_operands = 0 : i64, tpu.core_type = #tpu.core_type<tc>, window_params = [{transform_indices = @transform_0, window_bounds = array<i64: 512, 4>}, {transform_indices = @transform_1, window_bounds = array<i64: 512, 4>}, {pipeline_mode = #tpu.pipeline_mode<synchronous>, transform_indices = @transform_2, window_bounds = array<i64: 4, 16>}, {pipeline_mode = #tpu.pipeline_mode<synchronous>, transform_indices = @transform_3, window_bounds = array<i64: 1, 16>}, {pipeline_mode = #tpu.pipeline_mode<synchronous>, transform_indices = @transform_4, window_bounds = array<i64: 16, 4>}, {pipeline_mode = #tpu.pipeline_mode<synchronous>, transform_indices = @transform_5, window_bounds = array<i64: 1, 4>}, {transform_indices = @transform_6, window_bounds = array<i64: 512, 4>}]} {
    %c0 = arith.constant 0 : index
    %c0_0 = arith.constant 0 : index
    %0 = vector.load %arg1[%c0, %c0_0] : memref<512x4xf32, #tpu.memory_space<vmem>>, vector<512x4xf32>
    %c0_1 = arith.constant 0 : index
    %c0_2 = arith.constant 0 : index
    %1 = vector.load %arg2[%c0_1, %c0_2] : memref<512x4xf32, #tpu.memory_space<vmem>>, vector<512x4xf32>
    %2 = arith.addf %0, %1 : vector<512x4xf32>
    %3 = arith.truncf %2 : vector<512x4xf32> to vector<512x4xbf16>
    %c0_3 = arith.constant 0 : index
    %c0_4 = arith.constant 0 : index
    %4 = vector.load %arg3[%c0_3, %c0_4] : memref<4x16xbf16, #tpu.memory_space<vmem>>, vector<4x16xbf16>
    %cst = arith.constant dense<0.000000e+00> : vector<512x16xf32>
    %5 = tpu.matmul %3, %4, %cst {dimension_numbers = #tpu.dot_dimension_numbers<[1], [0], [0], [1], [0, 0, 1, 1], [], []>} : vector<512x4xbf16>, vector<4x16xbf16>, vector<512x16xf32> -> vector<512x16xf32>
    %c0_5 = arith.constant 0 : index
    %c0_6 = arith.constant 0 : index
    %6 = vector.load %arg4[%c0_5, %c0_6] : memref<1x16xf32, #tpu.memory_space<vmem>>, vector<1x16xf32>
    %7 = vector.broadcast %6 : vector<1x16xf32> to vector<512x16xf32>
    %8 = arith.addf %5, %7 : vector<512x16xf32>
    %cst_7 = arith.constant 0.000000e+00 : f32
    %9 = vector.broadcast %cst_7 : f32 to vector<512x16xf32>
    %10 = arith.maximumf %8, %9 : vector<512x16xf32>
    %11 = arith.truncf %10 : vector<512x16xf32> to vector<512x16xbf16>
    %c0_8 = arith.constant 0 : index
    %c0_9 = arith.constant 0 : index
    %12 = vector.load %arg5[%c0_8, %c0_9] : memref<16x4xbf16, #tpu.memory_space<vmem>>, vector<16x4xbf16>
    %cst_10 = arith.constant dense<0.000000e+00> : vector<512x4xf32>
    %13 = tpu.matmul %11, %12, %cst_10 {dimension_numbers = #tpu.dot_dimension_numbers<[1], [0], [0], [1], [0, 0, 1, 1], [], []>} : vector<512x16xbf16>, vector<16x4xbf16>, vector<512x4xf32> -> vector<512x4xf32>
    %c0_11 = arith.constant 0 : index
    %c0_12 = arith.constant 0 : index
    %14 = vector.load %arg6[%c0_11, %c0_12] : memref<1x4xf32, #tpu.memory_space<vmem>>, vector<1x4xf32>
    %15 = vector.broadcast %14 : vector<1x4xf32> to vector<512x4xf32>
    %16 = arith.addf %13, %15 : vector<512x4xf32>
    %c0_13 = arith.constant 0 : index
    %c0_14 = arith.constant 0 : index
    %17 = vector.load %arg7[%c0_13, %c0_14] : memref<512x4xf32, #tpu.memory_space<vmem>>, vector<512x4xf32>
    tpu.vector_store %arg7[%c0_13, %c0_14], %16 {strides = array<i32>} : memref<512x4xf32, #tpu.memory_space<vmem>>, vector<512x4xf32>,
    return
  }
  func.func @transform_0(%arg0: i32) -> (i32, i32) {
    %c0_i32 = arith.constant 0 : i32
    %c0_i32_0 = arith.constant 0 : i32
    return %arg0, %c0_i32 : i32, i32
  }
  func.func @transform_1(%arg0: i32) -> (i32, i32) {
    %c0_i32 = arith.constant 0 : i32
    %c0_i32_0 = arith.constant 0 : i32
    return %arg0, %c0_i32 : i32, i32
  }
  func.func @transform_2(%arg0: i32) -> (i32, i32) {
    %c0_i32 = arith.constant 0 : i32
    %c0_i32_0 = arith.constant 0 : i32
    %c0_i32_1 = arith.constant 0 : i32
    return %c0_i32, %c0_i32_0 : i32, i32
  }
  func.func @transform_3(%arg0: i32) -> (i32, i32) {
    %c0_i32 = arith.constant 0 : i32
    %c0_i32_0 = arith.constant 0 : i32
    %c0_i32_1 = arith.constant 0 : i32
    return %c0_i32, %c0_i32_0 : i32, i32
  }
  func.func @transform_4(%arg0: i32) -> (i32, i32) {
    %c0_i32 = arith.constant 0 : i32
    %c0_i32_0 = arith.constant 0 : i32
    %c0_i32_1 = arith.constant 0 : i32
    return %c0_i32, %c0_i32_0 : i32, i32
  }
  func.func @transform_5(%arg0: i32) -> (i32, i32) {
    %c0_i32 = arith.constant 0 : i32
    %c0_i32_0 = arith.constant 0 : i32
    %c0_i32_1 = arith.constant 0 : i32
    return %c0_i32, %c0_i32_0 : i32, i32
  }
  func.func @transform_6(%arg0: i32) -> (i32, i32) {
    %c0_i32 = arith.constant 0 : i32
    %c0_i32_0 = arith.constant 0 : i32
    return %arg0, %c0_i32 : i32, i32
  }
}

</mosaic_0001>

<llo_original>
// kernel: custom-call
$region0: #{custom-call}
  %s0 = inlined_call_operand.hbm [shape: c64[4,4,8], index: 0, kind: input, shape index: {}]
  %s1 = inlined_call_operand.vmem [shape: f32[4,4,8], index: 1, kind: output, shape index: {}]
  $region1: #{custom-call} parent=0
    #allocation0 [shape = 's32[1]{0}', space=sflag, size = 0x4, scoped, tag = 'scoped memory for custom-call']
    %2 = vsyncpa [#allocation0], 0
    %s3 = sshll.u32 %s1, 4
    %s4 = int_to_ptr.vmem [resolvable:$true] %s3
    %6 = dma.hbm_to_vmem [thread:$0]  %s0, 256, %s4, [#allocation0]
    %7 = dma.done [#allocation0], 256
    %8 = vsyncpa [#allocation0], 1

// kernel: custom-call.1
$region0: #{custom-call.1}
  %s0 = inlined_call_operand.hbm [shape: c64[4,4,8], index: 0, kind: input, shape index: {}]
  %s1 = inlined_call_operand.vmem [shape: f32[4,4,8], index: 1, kind: output, shape index: {}]
  %s2 = scalar_lea.hbm %s0, 256
  $region1: #{custom-call.1} parent=0
    #allocation0 [shape = 's32[1]{0}', space=sflag, size = 0x4, scoped, tag = 'scoped memory for custom-call.1']
    %3 = vsyncpa [#allocation0], 0
    %s4 = sshll.u32 %s1, 4
    %s5 = int_to_ptr.vmem [resolvable:$true] %s4
    %7 = dma.hbm_to_vmem [thread:$0]  %s2, 256, %s5, [#allocation0]
    %8 = dma.done [#allocation0], 256
    %9 = vsyncpa [#allocation0], 1

// kernel: spectral_conv2d_forward.4
$region0: #{spectral_conv2d_forward.4}
  #allocation0 [shape = 'u32[]', space=smem, size = 0x4, offset = 0x4, fixed_abs, tag = 'smem constant byte address 0x4 - core index']
  #allocation1 [shape = 'u32[144,128]{1,0:T(1,128)}', space=vmem, size = 0x12000, scoped, tag = 'internal scratch']
  %s0 = inlined_call_operand.hbm [shape: f32[32,64], index: 0, kind: input, shape index: {}]
  %s1 = inlined_call_operand.hbm [shape: f32[64,64], index: 1, kind: input, shape index: {}]
  %s2 = inlined_call_operand.hbm [shape: f32[32,64], index: 2, kind: output, shape index: {}]
  %s3 = sld [smem:[#allocation0]]
  $region26: #{spectral_conv2d_forward.4} parent=0
    _
  %s5 = ssub.s32 1, %s3
  %s6 = scalar_select 0, %s5, %s3
  $region1: #{spectral_conv2d_forward.4} parent=0
    #allocation2 [shape = 'u8[16384]{0}', space=vmem, size = 0x4000, scoped, tag = 'input window, operand 0, single buffered']
    #allocation3 [shape = 's32[1]{0}', space=sflag, size = 0x4, scoped, tag = 'scoped memory for spectral_conv2d_forward.4']
    #allocation4 [shape = 's32[1]{0}', space=sflag, size = 0x4, scoped, tag = 'scoped memory for spectral_conv2d_forward.4']
    #allocation5 [shape = 'u8[32768]{0}', space=vmem, size = 0x8000, scoped, tag = 'input window, operand 1, single buffered']
    #allocation6 [shape = 's32[1]{0}', space=sflag, size = 0x4, scoped, tag = 'scoped memory for spectral_conv2d_forward.4']
    #allocation7 [shape = 'u8[16384]{0}', space=vmem, size = 0x4000, scoped, tag = 'output window, operand 0, single buffered']
    %7 = vsyncpa [#allocation3], 0
    %8 = vsyncpa [#allocation6], 0
    %9 = vsyncpa [#allocation4], 0
    // Predicated region
    $region2: #{spectral_conv2d_forward.4} parent=1 // pred_check
      _
    $region3: #{spectral_conv2d_forward.4} parent=1 // pred_check_branch
      %11 = sbr.rel (0) target = $region5
    $region4: #{spectral_conv2d_forward.4} parent=1 // pred_region
      %s13 = ssub.s32 512, 512
      %14 = vsyncadd [#allocation3], %s13
      %s15 = sshll.u32 [#allocation2], 4
      %s16 = int_to_ptr.vmem [resolvable:$true] %s15
      %21 = dma.hbm_to_vmem [thread:$0]  %s0, 512, %s16, [#allocation3], 128, 128, 8
    $region5: #{spectral_conv2d_forward.4} parent=1 // pred_fallthru
      _
    // Predicated region
    $region6: #{spectral_conv2d_forward.4} parent=1 // pred_check
      _
    $region7: #{spectral_conv2d_forward.4} parent=1 // pred_check_branch
      %23 = sbr.rel (0) target = $region9
    $region8: #{spectral_conv2d_forward.4} parent=1 // pred_region
      %s25 = ssub.s32 1024, 1024
      %26 = vsyncadd [#allocation6], %s25
      %s27 = sshll.u32 [#allocation5], 4
      %s28 = int_to_ptr.vmem [resolvable:$true] %s27
      %33 = dma.hbm_to_vmem [thread:$0]  %s1, 1024, %s28, [#allocation6], 128, 128, 8
    $region9: #{spectral_conv2d_forward.4} parent=1 // pred_fallthru
      _
    // Predicated region
    $region10: #{spectral_conv2d_forward.4} parent=1 // pred_check
      _
    $region11: #{spectral_conv2d_forward.4} parent=1 // pred_check_branch
      %35 = sbr.rel (0) target = $region13
    $region12: #{spectral_conv2d_forward.4} parent=1 // pred_region
      %36 = dma.done [#allocation3], 512
    $region13: #{spectral_conv2d_forward.4} parent=1 // pred_fallthru
      _
    // Predicated region
    $region14: #{spectral_conv2d_forward.4} parent=1 // pred_check
      _
    $region15: #{spectral_conv2d_forward.4} parent=1 // pred_check_branch
      %38 = sbr.rel (0) target = $region17
    $region16: #{spectral_conv2d_forward.4} parent=1 // pred_region
      %39 = dma.done [#allocation6], 1024
    $region17: #{spectral_conv2d_forward.4} parent=1 // pred_fallthru
      _
    %v40 = vld [vmem:[#allocation2] sm:$0xff]
    %v41 = vld [vmem:[#allocation2 + $0x8] sm:$0xff]
    %v42 = vld [vmem:[#allocation2 + $0x10] sm:$0xff]
    %v43 = vld [vmem:[#allocation2 + $0x18] sm:$0xff]
    %v44 = vld [vmem:[#allocation5] sm:$0xff]
    %v45 = vld [vmem:[#allocation5 + $0x8] sm:$0xff]
    %v46 = vld [vmem:[#allocation5 + $0x10] sm:$0xff]
    %v47 = vld [vmem:[#allocation5 + $0x18] sm:$0xff]
    %v48 = vld [vmem:[#allocation5 + $0x20] sm:$0xff]
    %v49 = vld [vmem:[#allocation5 + $0x28] sm:$0xff]
    %v50 = vld [vmem:[#allocation5 + $0x30] sm:$0xff]
    %v51 = vld [vmem:[#allocation5 + $0x38] sm:$0xff]
    %vm52 = vcmask 523264
    %v54 = vsel %vm52, %v40, 0
    %v57 = vsel %vm52, %v41, 0
    %v60 = vsel %vm52, %v42, 0
    %v63 = vsel %vm52, %v43, 0
    %65 = vmatprep.subr.mxu0 0.0
    %v66 = vand.u32 %v44, 4294901760
    %67 = vmatpush1.msra.mxu0 %v66
    %68 = vmatprep.subr.mxu0 0.0
    %v69 = vand.u32 %v45, 4294901760
    %70 = vmatpush1.msra.mxu0 %v69
    %71 = vmatprep.subr.mxu0 0.0
    %v72 = vand.u32 %v46, 4294901760
    %73 = vmatpush1.msra.mxu0 %v72
    %74 = vmatprep.subr.mxu0 0.0
    %v75 = vand.u32 %v47, 4294901760
    %76 = vmatpush1.msra.mxu0 %v75
    %77 = vmatprep.subr.mxu0 0.0
    %v78 = vand.u32 %v48, 4294901760
    %79 = vmatpush1.msra.mxu0 %v78
    %80 = vmatprep.subr.mxu0 0.0
    %v81 = vand.u32 %v49, 4294901760
    %82 = vmatpush1.msra.mxu0 %v81
    %83 = vmatprep.subr.mxu0 0.0
    %v84 = vand.u32 %v50, 4294901760
    %85 = vmatpush1.msra.mxu0 %v84
    %86 = vmatprep.subr.mxu0 0.0
    %v87 = vand.u32 %v51, 4294901760
    %88 = vmatpush1.msra.mxu0 %v87
    %89 = vmatprep.subr.mxu0 0.0
    %90 = vmatpush1.msra.mxu0 0.0
    %91 = vmatprep.subr.mxu0 0.0
    %92 = vmatpush1.msra.mxu0 0.0
    %93 = vmatprep.subr.mxu0 0.0
    %94 = vmatpush1.msra.mxu0 0.0
    %95 = vmatprep.subr.mxu0 0.0
    %96 = vmatpush1.msra.mxu0 0.0
    %97 = vmatprep.subr.mxu0 0.0
    %98 = vmatpush1.msra.mxu0 0.0
    %99 = vmatprep.subr.mxu0 0.0
    %100 = vmatpush1.msra.mxu0 0.0
    %101 = vmatprep.subr.mxu0 0.0
    %102 = vmatpush1.msra.mxu0 0.0
    %103 = vmatprep.subr.mxu0 0.0
    %104 = vmatpush1.msra.mxu0 0.0
    %105 = vmatprep.subr.mxu0 0.0
    %106 = vmatpush1.msra.mxu0 0.0
    %107 = vmatprep.subr.mxu0 0.0
    %108 = vmatpush1.msra.mxu0 0.0
    %109 = vmatprep.subr.mxu0 0.0
    %110 = vmatpush1.msra.mxu0 0.0
    %111 = vmatprep.subr.mxu0 0.0
    %112 = vmatpush1.msra.mxu0 0.0
    %113 = vmatprep.subr.mxu0 0.0
    %114 = vmatpush1.msra.mxu0 0.0
    %115 = vmatprep.subr.mxu0 0.0
    %116 = vmatpush1.msra.mxu0 0.0
    %117 = vmatprep.subr.mxu0 0.0
    %118 = vmatpush1.msra.mxu0 0.0
    %119 = vmatprep.subr.mxu0 0.0
    %120 = vmatpush1.msra.mxu0 0.0
    %121 = vmatprep.subr.mxu0 0.0
    %122 = vmatpush1.msra.mxu0 0.0
    %123 = vmatprep.subr.mxu0 0.0
    %124 = vmatpush1.msra.mxu0 0.0
    %125 = vmatprep.subr.mxu0 0.0
    %126 = vmatpush1.msra.mxu0 0.0
    %127 = vmatprep.subr.mxu0 0.0
    %128 = vmatpush1.msra.mxu0 0.0
    %129 = vmatprep.subr.mxu0 0.0
    %130 = vmatpush1.msra.mxu0 0.0
    %131 = vmatprep.subr.mxu0 0.0
    %132 = vmatpush1.msra.mxu0 0.0
    %133 = vmatprep.subr.mxu0 0.0
    %134 = vmatpush1.msra.mxu0 0.0
    %135 = vmatprep.subr.mxu0 0.0
    %136 = vmatpush1.msra.mxu0 0.0
    %137 = vmatprep.mubr.f32.mxu0 0.0
    %v138 = vand.u32 %v54, 4294901760
    %v139 = vsub.f32 %v54, %v138
    %v140 = vand.u32 %v139, 4294901760
    %v141 = vsub.f32 %v139, %v140
    %v142 = vand.u32 %v141, 4294901760
    %143 = vmatmul.mubr.f32.gmra.mrb[0].mxu0 %v142
    %v144 = vpop.f32.mrb[0].mxu0
    %v145 = vadd.f32 0.0, %v144
    %v146 = vpop.f32.mrb[0].mxu0
    %147 = vmatprep.mubr.f32.mxu0 0.0
    %v148 = vand.u32 %v57, 4294901760
    %v149 = vsub.f32 %v57, %v148
    %v150 = vand.u32 %v149, 4294901760
    %v151 = vsub.f32 %v149, %v150
    %v152 = vand.u32 %v151, 4294901760
    %153 = vmatmul.mubr.f32.gmra.mrb[0].mxu0 %v152
    %v154 = vpop.f32.mrb[0].mxu0
    %v155 = vadd.f32 0.0, %v154
    %v156 = vpop.f32.mrb[0].mxu0
    %157 = vmatprep.mubr.f32.mxu0 0.0
    %v158 = vand.u32 %v60, 4294901760
    %v159 = vsub.f32 %v60, %v158
    %v160 = vand.u32 %v159, 4294901760
    %v161 = vsub.f32 %v159, %v160
    %v162 = vand.u32 %v161, 4294901760
    %163 = vmatmul.mubr.f32.gmra.mrb[0].mxu0 %v162
    %v164 = vpop.f32.mrb[0].mxu0
    %v165 = vadd.f32 0.0, %v164
    %v166 = vpop.f32.mrb[0].mxu0
    %167 = vmatprep.mubr.f32.mxu0 0.0
    %v168 = vand.u32 %v63, 4294901760
    %v169 = vsub.f32 %v63, %v168
    %v170 = vand.u32 %v169, 4294901760
    %v171 = vsub.f32 %v169, %v170
    %v172 = vand.u32 %v171, 4294901760
    %173 = vmatmul.mubr.f32.gmra.mrb[0].mxu0 %v172
    %v174 = vpop.f32.mrb[0].mxu0
    %v175 = vadd.f32 0.0, %v174
    %v176 = vpop.f32.mrb[0].mxu0
    %177 = vdwg.mxu0
    %178 = vmatprep.subr.mxu0 0.0
    %v179 = vand.u32 %v44, 4294901760
    %v180 = vsub.f32 %v44, %v179
    %v181 = vand.u32 %v180, 4294901760
    %v182 = vsub.f32 %v180, %v181
    %v183 = vand.u32 %v182, 4294901760
    %184 = vmatpush1.msra.mxu0 %v183
    %185 = vmatprep.subr.mxu0 0.0
    %v186 = vand.u32 %v45, 4294901760
    %v187 = vsub.f32 %v45, %v186
    %v188 = vand.u32 %v187, 4294901760
    %v189 = vsub.f32 %v187, %v188
    %v190 = vand.u32 %v189, 4294901760
    %191 = vmatpush1.msra.mxu0 %v190
    %192 = vmatprep.subr.mxu0 0.0
    %v193 = vand.u32 %v46, 4294901760
    %v194 = vsub.f32 %v46, %v193
    %v195 = vand.u32 %v194, 4294901760
    %v196 = vsub.f32 %v194, %v195
    %v197 = vand.u32 %v196, 4294901760
    %198 = vmatpush1.msra.mxu0 %v197
    %199 = vmatprep.subr.mxu0 0.0
    %v200 = vand.u32 %v47, 4294901760
    %v201 = vsub.f32 %v47, %v200
    %v202 = vand.u32 %v201, 4294901760
    %v203 = vsub.f32 %v201, %v202
    %v204 = vand.u32 %v203, 4294901760
    %205 = vmatpush1.msra.mxu0 %v204
    %206 = vmatprep.subr.mxu0 0.0
    %v207 = vand.u32 %v48, 4294901760
    %v208 = vsub.f32 %v48, %v207
    %v209 = vand.u32 %v208, 4294901760
    %v210 = vsub.f32 %v208, %v209
    %v211 = vand.u32 %v210, 4294901760
    %212 = vmatpush1.msra.mxu0 %v211
    %213 = vmatprep.subr.mxu0 0.0
    %v214 = vand.u32 %v49, 4294901760
    %v215 = vsub.f32 %v49, %v214
    %v216 = vand.u32 %v215, 4294901760
    %v217 = vsub.f32 %v215, %v216
    %v218 = vand.u32 %v217, 4294901760
    %219 = vmatpush1.msra.mxu0 %v218
    %220 = vmatprep.subr.mxu0 0.0
    %v221 = vand.u32 %v50, 4294901760
    %v222 = vsub.f32 %v50, %v221
    %v223 = vand.u32 %v222, 4294901760
    %v224 = vsub.f32 %v222, %v223
    %v225 = vand.u32 %v224, 4294901760
    %226 = vmatpush1.msra.mxu0 %v225
    %227 = vmatprep.subr.mxu0 0.0
    %v228 = vand.u32 %v51, 4294901760
    %v229 = vsub.f32 %v51, %v228
    %v230 = vand.u32 %v229, 4294901760
    %v231 = vsub.f32 %v229, %v230
    %v232 = vand.u32 %v231, 4294901760
    %233 = vmatpush1.msra.mxu0 %v232
    %234 = vmatprep.subr.mxu0 0.0
    %235 = vmatpush1.msra.mxu0 0.0
    %236 = vmatprep.subr.mxu0 0.0
    %237 = vmatpush1.msra.mxu0 0.0
    %238 = vmatprep.subr.mxu0 0.0
    %239 = vmatpush1.msra.mxu0 0.0
    %240 = vmatprep.subr.mxu0 0.0
    %241 = vmatpush1.msra.mxu0 0.0
    %242 = vmatprep.subr.mxu0 0.0
    %243 = vmatpush1.msra.mxu0 0.0
    %244 = vmatprep.subr.mxu0 0.0
    %245 = vmatpush1.msra.mxu0 0.0
    %246 = vmatprep.subr.mxu0 0.0
    %247 = vmatpush1.msra.mxu0 0.0
    %248 = vmatprep.subr.mxu0 0.0
    %249 = vmatpush1.msra.mxu0 0.0
    %250 = vmatprep.subr.mxu0 0.0
    %251 = vmatpush1.msra.mxu0 0.0
    %252 = vmatprep.subr.mxu0 0.0
    %253 = vmatpush1.msra.mxu0 0.0
    %254 = vmatprep.subr.mxu0 0.0
    %255 = vmatpush1.msra.mxu0 0.0
    %256 = vmatprep.subr.mxu0 0.0
    %257 = vmatpush1.msra.mxu0 0.0
    %258 = vmatprep.subr.mxu0 0.0
    %259 = vmatpush1.msra.mxu0 0.0
    %260 = vmatprep.subr.mxu0 0.0
    %261 = vmatpush1.msra.mxu0 0.0
    %262 = vmatprep.subr.mxu0 0.0
    %263 = vmatpush1.msra.mxu0 0.0
    %264 = vmatprep.subr.mxu0 0.0
    %265 = vmatpush1.msra.mxu0 0.0
    %266 = vmatprep.subr.mxu0 0.0
    %267 = vmatpush1.msra.mxu0 0.0
    %268 = vmatprep.subr.mxu0 0.0
    %269 = vmatpush1.msra.mxu0 0.0
    %270 = vmatprep.subr.mxu0 0.0
    %271 = vmatpush1.msra.mxu0 0.0
    %272 = vmatprep.subr.mxu0 0.0
    %273 = vmatpush1.msra.mxu0 0.0
    %274 = vmatprep.subr.mxu0 0.0
    %275 = vmatpush1.msra.mxu0 0.0
    %276 = vmatprep.subr.mxu0 0.0
    %277 = vmatpush1.msra.mxu0 0.0
    %278 = vmatprep.subr.mxu0 0.0
    %279 = vmatpush1.msra.mxu0 0.0
    %280 = vmatprep.subr.mxu0 0.0
    %281 = vmatpush1.msra.mxu0 0.0
    %282 = vmatprep.mubr.f32.mxu0 0.0
    %v283 = vand.u32 %v54, 4294901760
    %284 = vmatmul.mubr.f32.gmra.mrb[0].mxu0 %v283
    %v285 = vpop.f32.mrb[0].mxu0
    %v286 = vadd.f32 %v145, %v285
    %v287 = vpop.f32.mrb[0].mxu0
    %288 = vmatprep.mubr.f32.mxu0 0.0
    %v289 = vand.u32 %v57, 4294901760
    %290 = vmatmul.mubr.f32.gmra.mrb[0].mxu0 %v289
    %v291 = vpop.f32.mrb[0].mxu0
    %v292 = vadd.f32 %v155, %v291
    %v293 = vpop.f32.mrb[0].mxu0
    %294 = vmatprep.mubr.f32.mxu0 0.0
    %v295 = vand.u32 %v60, 4294901760
    %296 = vmatmul.mubr.f32.gmra.mrb[0].mxu0 %v295
    %v297 = vpop.f32.mrb[0].mxu0
    %v298 = vadd.f32 %v165, %v297
    %v299 = vpop.f32.mrb[0].mxu0
    %300 = vmatprep.mubr.f32.mxu0 0.0
    %v301 = vand.u32 %v63, 4294901760
    %302 = vmatmul.mubr.f32.gmra.mrb[0].mxu0 %v301
    %v303 = vpop.f32.mrb[0].mxu0
    %v304 = vadd.f32 %v175, %v303
    %v305 = vpop.f32.mrb[0].mxu0
    %306 = vdwg.mxu0
    %307 = vmatprep.subr.mxu0 0.0
    %v308 = vand.u32 %v44, 4294901760
    %v309 = vsub.f32 %v44, %v308
    %310 = vmatpush1.msra.mxu0 %v309
    %311 = vmatprep.subr.mxu0 0.0
    %v312 = vand.u32 %v45, 4294901760
    %v313 = vsub.f32 %v45, %v312
    %314 = vmatpush1.msra.mxu0 %v313
    %315 = vmatprep.subr.mxu0 0.0
    %v316 = vand.u32 %v46, 4294901760
    %v317 = vsub.f32 %v46, %v316
    %318 = vmatpush1.msra.mxu0 %v317
    %319 = vmatprep.subr.mxu0 0.0
    %v320 = vand.u32 %v47, 4294901760
    %v321 = vsub.f32 %v47, %v320
    %322 = vmatpush1.msra.mxu0 %v321
    %323 = vmatprep.subr.mxu0 0.0
    %v324 = vand.u32 %v48, 4294901760
    %v325 = vsub.f32 %v48, %v324
    %326 = vmatpush1.msra.mxu0 %v325
    %327 = vmatprep.subr.mxu0 0.0
    %v328 = vand.u32 %v49, 4294901760
    %v329 = vsub.f32 %v49, %v328
    %330 = vmatpush1.msra.mxu0 %v329
    %331 = vmatprep.subr.mxu0 0.0
    %v332 = vand.u32 %v50, 4294901760
    %v333 = vsub.f32 %v50, %v332
    %334 = vmatpush1.msra.mxu0 %v333
    %335 = vmatprep.subr.mxu0 0.0
    %v336 = vand.u32 %v51, 4294901760
    %v337 = vsub.f32 %v51, %v336
    %338 = vmatpush1.msra.mxu0 %v337
    %339 = vmatprep.subr.mxu0 0.0
    %340 = vmatpush1.msra.mxu0 0.0
    %341 = vmatprep.subr.mxu0 0.0
    %342 = vmatpush1.msra.mxu0 0.0
    %343 = vmatprep.subr.mxu0 0.0
    %344 = vmatpush1.msra.mxu0 0.0
    %345 = vmatprep.subr.mxu0 0.0
    %346 = vmatpush1.msra.mxu0 0.0
    %347 = vmatprep.subr.mxu0 0.0
    %348 = vmatpush1.msra.mxu0 0.0
    %349 = vmatprep.subr.mxu0 0.0
    %350 = vmatpush1.msra.mxu0 0.0
    %351 = vmatprep.subr.mxu0 0.0
    %352 = vmatpush1.msra.mxu0 0.0
    %353 = vmatprep.subr.mxu0 0.0
    %354 = vmatpush1.msra.mxu0 0.0
    %355 = vmatprep.subr.mxu0 0.0
    %356 = vmatpush1.msra.mxu0 0.0
    %357 = vmatprep.subr.mxu0 0.0
    %358 = vmatpush1.msra.mxu0 0.0
    %359 = vmatprep.subr.mxu0 0.0
    %360 = vmatpush1.msra.mxu0 0.0
    %361 = vmatprep.subr.mxu0 0.0
    %362 = vmatpush1.msra.mxu0 0.0
    %363 = vmatprep.subr.mxu0 0.0
    %364 = vmatpush1.msra.mxu0 0.0
    %365 = vmatprep.subr.mxu0 0.0
    %366 = vmatpush1.msra.mxu0 0.0
    %367 = vmatprep.subr.mxu0 0.0
    %368 = vmatpush1.msra.mxu0 0.0
    %369 = vmatprep.subr.mxu0 0.0
    %370 = vmatpush1.msra.mxu0 0.0
    %371 = vmatprep.subr.mxu0 0.0
    %372 = vmatpush1.msra.mxu0 0.0
    %373 = vmatprep.subr.mxu0 0.0
    %374 = vmatpush1.msra.mxu0 0.0
    %375 = vmatprep.subr.mxu0 0.0
    %376 = vmatpush1.msra.mxu0 0.0
    %377 = vmatprep.subr.mxu0 0.0
    %378 = vmatpush1.msra.mxu0 0.0
    %379 = vmatprep.subr.mxu0 0.0
    %380 = vmatpush1.msra.mxu0 0.0
    %381 = vmatprep.subr.mxu0 0.0
    %382 = vmatpush1.msra.mxu0 0.0
    %383 = vmatprep.subr.mxu0 0.0
    %384 = vmatpush1.msra.mxu0 0.0
    %385 = vmatprep.subr.mxu0 0.0
    %386 = vmatpush1.msra.mxu0 0.0
    %387 = vmatprep.mubr.f32.mxu0 0.0
    %v388 = vand.u32 %v54, 4294901760
    %v389 = vsub.f32 %v54, %v388
    %390 = vmatmul.mubr.f32.gmra.mrb[0].mxu0 %v389
    %v391 = vpop.f32.mrb[0].mxu0
    %v392 = vadd.f32 %v286, %v391
    %v393 = vpop.f32.mrb[0].mxu0
    %394 = vmatprep.mubr.f32.mxu0 0.0
    %v395 = vand.u32 %v57, 4294901760
    %v396 = vsub.f32 %v57, %v395
    %397 = vmatmul.mubr.f32.gmra.mrb[0].mxu0 %v396
    %v398 = vpop.f32.mrb[0].mxu0
    %v399 = vadd.f32 %v292, %v398
    %v400 = vpop.f32.mrb[0].mxu0
    %401 = vmatprep.mubr.f32.mxu0 0.0
    %v402 = vand.u32 %v60, 4294901760
    %v403 = vsub.f32 %v60, %v402
    %404 = vmatmul.mubr.f32.gmra.mrb[0].mxu0 %v403
    %v405 = vpop.f32.mrb[0].mxu0
    %v406 = vadd.f32 %v298, %v405
    %v407 = vpop.f32.mrb[0].mxu0
    %408 = vmatprep.mubr.f32.mxu0 0.0
    %v409 = vand.u32 %v63, 4294901760
    %v410 = vsub.f32 %v63, %v409
    %411 = vmatmul.mubr.f32.gmra.mrb[0].mxu0 %v410
    %v412 = vpop.f32.mrb[0].mxu0
    %v413 = vadd.f32 %v304, %v412
    %v414 = vpop.f32.mrb[0].mxu0
    %415 = vdwg.mxu0
    %416 = vmatprep.subr.mxu0 0.0
    %v417 = vand.u32 %v44, 4294901760
    %418 = vmatpush1.msra.mxu0 %v417
    %419 = vmatprep.subr.mxu0 0.0
    %v420 = vand.u32 %v45, 4294901760
    %421 = vmatpush1.msra.mxu0 %v420
    %422 = vmatprep.subr.mxu0 0.0
    %v423 = vand.u32 %v46, 4294901760
    %424 = vmatpush1.msra.mxu0 %v423
    %425 = vmatprep.subr.mxu0 0.0
    %v426 = vand.u32 %v47, 4294901760
    %427 = vmatpush1.msra.mxu0 %v426
    %428 = vmatprep.subr.mxu0 0.0
    %v429 = vand.u32 %v48, 4294901760
    %430 = vmatpush1.msra.mxu0 %v429
    %431 = vmatprep.subr.mxu0 0.0
    %v432 = vand.u32 %v49, 4294901760
    %433 = vmatpush1.msra.mxu0 %v432
    %434 = vmatprep.subr.mxu0 0.0
    %v435 = vand.u32 %v50, 4294901760
    %436 = vmatpush1.msra.mxu0 %v435
    %437 = vmatprep.subr.mxu0 0.0
    %v438 = vand.u32 %v51, 4294901760
    %439 = vmatpush1.msra.mxu0 %v438
    %440 = vmatprep.subr.mxu0 0.0
    %441 = vmatpush1.msra.mxu0 0.0
    %442 = vmatprep.subr.mxu0 0.0
    %443 = vmatpush1.msra.mxu0 0.0
    %444 = vmatprep.subr.mxu0 0.0
    %445 = vmatpush1.msra.mxu0 0.0
    %446 = vmatprep.subr.mxu0 0.0
    %447 = vmatpush1.msra.mxu0 0.0
    %448 = vmatprep.subr.mxu0 0.0
    %449 = vmatpush1.msra.mxu0 0.0
    %450 = vmatprep.subr.mxu0 0.0
    %451 = vmatpush1.msra.mxu0 0.0
    %452 = vmatprep.subr.mxu0 0.0
    %453 = vmatpush1.msra.mxu0 0.0
    %454 = vmatprep.subr.mxu0 0.0
    %455 = vmatpush1.msra.mxu0 0.0
    %456 = vmatprep.subr.mxu0 0.0
    %457 = vmatpush1.msra.mxu0 0.0
    %458 = vmatprep.subr.mxu0 0.0
    %459 = vmatpush1.msra.mxu0 0.0
    %460 = vmatprep.subr.mxu0 0.0
    %461 = vmatpush1.msra.mxu0 0.0
    %462 = vmatprep.subr.mxu0 0.0
    %463 = vmatpush1.msra.mxu0 0.0
    %464 = vmatprep.subr.mxu0 0.0
    %465 = vmatpush1.msra.mxu0 0.0
    %466 = vmatprep.subr.mxu0 0.0
    %467 = vmatpush1.msra.mxu0 0.0
    %468 = vmatprep.subr.mxu0 0.0
    %469 = vmatpush1.msra.mxu0 0.0
    %470 = vmatprep.subr.mxu0 0.0
    %471 = vmatpush1.msra.mxu0 0.0
    %472 = vmatprep.subr.mxu0 0.0
    %473 = vmatpush1.msra.mxu0 0.0
    %474 = vmatprep.subr.mxu0 0.0
    %475 = vmatpush1.msra.mxu0 0.0
    %476 = vmatprep.subr.mxu0 0.0
    %477 = vmatpush1.msra.mxu0 0.0
    %478 = vmatprep.subr.mxu0 0.0
    %479 = vmatpush1.msra.mxu0 0.0
    %480 = vmatprep.subr.mxu0 0.0
    %481 = vmatpush1.msra.mxu0 0.0
    %482 = vmatprep.subr.mxu0 0.0
    %483 = vmatpush1.msra.mxu0 0.0
    %484 = vmatprep.subr.mxu0 0.0
    %485 = vmatpush1.msra.mxu0 0.0
    %486 = vmatprep.subr.mxu0 0.0
    %487 = vmatpush1.msra.mxu0 0.0
    %488 = vmatprep.mubr.f32.mxu0 0.0
    %v489 = vand.u32 %v54, 4294901760
    %v490 = vsub.f32 %v54, %v489
    %v491 = vand.u32 %v490, 4294901760
    %492 = vmatmul.mubr.f32.gmra.mrb[0].mxu0 %v491
    %v493 = vpop.f32.mrb[0].mxu0
    %v494 = vadd.f32 %v392, %v493
    %v495 = vpop.f32.mrb[0].mxu0
    %496 = vmatprep.mubr.f32.mxu0 0.0
    %v497 = vand.u32 %v57, 4294901760
    %v498 = vsub.f32 %v57, %v497
    %v499 = vand.u32 %v498, 4294901760
    %500 = vmatmul.mubr.f32.gmra.mrb[0].mxu0 %v499
    %v501 = vpop.f32.mrb[0].mxu0
    %v502 = vadd.f32 %v399, %v501
    %v503 = vpop.f32.mrb[0].mxu0
    %504 = vmatprep.mubr.f32.mxu0 0.0
    %v505 = vand.u32 %v60, 4294901760
    %v506 = vsub.f32 %v60, %v505
    %v507 = vand.u32 %v506, 4294901760
    %508 = vmatmul.mubr.f32.gmra.mrb[0].mxu0 %v507
    %v509 = vpop.f32.mrb[0].mxu0
    %v510 = vadd.f32 %v406, %v509
    %v511 = vpop.f32.mrb[0].mxu0
    %512 = vmatprep.mubr.f32.mxu0 0.0
    %v513 = vand.u32 %v63, 4294901760
    %v514 = vsub.f32 %v63, %v513
    %v515 = vand.u32 %v514, 4294901760
    %516 = vmatmul.mubr.f32.gmra.mrb[0].mxu0 %v515
    %v517 = vpop.f32.mrb[0].mxu0
    %v518 = vadd.f32 %v413, %v517
    %v519 = vpop.f32.mrb[0].mxu0
    %520 = vdwg.mxu0
    %521 = vmatprep.subr.mxu0 0.0
    %v522 = vand.u32 %v44, 4294901760
    %v523 = vsub.f32 %v44, %v522
    %v524 = vand.u32 %v523, 4294901760
    %525 = vmatpush1.msra.mxu0 %v524
    %526 = vmatprep.subr.mxu0 0.0
    %v527 = vand.u32 %v45, 4294901760
    %v528 = vsub.f32 %v45, %v527
    %v529 = vand.u32 %v528, 4294901760
    %530 = vmatpush1.msra.mxu0 %v529
    %531 = vmatprep.subr.mxu0 0.0
    %v532 = vand.u32 %v46, 4294901760
    %v533 = vsub.f32 %v46, %v532
    %v534 = vand.u32 %v533, 4294901760
    %535 = vmatpush1.msra.mxu0 %v534
    %536 = vmatprep.subr.mxu0 0.0
    %v537 = vand.u32 %v47, 4294901760
    %v538 = vsub.f32 %v47, %v537
    %v539 = vand.u32 %v538, 4294901760
    %540 = vmatpush1.msra.mxu0 %v539
    %541 = vmatprep.subr.mxu0 0.0
    %v542 = vand.u32 %v48, 4294901760
    %v543 = vsub.f32 %v48, %v542
    %v544 = vand.u32 %v543, 4294901760
    %545 = vmatpush1.msra.mxu0 %v544
    %546 = vmatprep.subr.mxu0 0.0
    %v547 = vand.u32 %v49, 4294901760
    %v548 = vsub.f32 %v49, %v547
    %v549 = vand.u32 %v548, 4294901760
    %550 = vmatpush1.msra.mxu0 %v549
    %551 = vmatprep.subr.mxu0 0.0
    %v552 = vand.u32 %v50, 4294901760
    %v553 = vsub.f32 %v50, %v552
    %v554 = vand.u32 %v553, 4294901760
    %555 = vmatpush1.msra.mxu0 %v554
    %556 = vmatprep.subr.mxu0 0.0
    %v557 = vand.u32 %v51, 4294901760
    %v558 = vsub.f32 %v51, %v557
    %v559 = vand.u32 %v558, 4294901760
    %560 = vmatpush1.msra.mxu0 %v559
    %561 = vmatprep.subr.mxu0 0.0
    %562 = vmatpush1.msra.mxu0 0.0
    %563 = vmatprep.subr.mxu0 0.0
    %564 = vmatpush1.msra.mxu0 0.0
    %565 = vmatprep.subr.mxu0 0.0
    %566 = vmatpush1.msra.mxu0 0.0
    %567 = vmatprep.subr.mxu0 0.0
    %568 = vmatpush1.msra.mxu0 0.0
    %569 = vmatprep.subr.mxu0 0.0
    %570 = vmatpush1.msra.mxu0 0.0
    %571 = vmatprep.subr.mxu0 0.0
    %572 = vmatpush1.msra.mxu0 0.0
    %573 = vmatprep.subr.mxu0 0.0
    %574 = vmatpush1.msra.mxu0 0.0
    %575 = vmatprep.subr.mxu0 0.0
    %576 = vmatpush1.msra.mxu0 0.0
    %577 = vmatprep.subr.mxu0 0.0
    %578 = vmatpush1.msra.mxu0 0.0
    %579 = vmatprep.subr.mxu0 0.0
    %580 = vmatpush1.msra.mxu0 0.0
    %581 = vmatprep.subr.mxu0 0.0
    %582 = vmatpush1.msra.mxu0 0.0
    %583 = vmatprep.subr.mxu0 0.0
    %584 = vmatpush1.msra.mxu0 0.0
    %585 = vmatprep.subr.mxu0 0.0
    %586 = vmatpush1.msra.mxu0 0.0
    %587 = vmatprep.subr.mxu0 0.0
    %588 = vmatpush1.msra.mxu0 0.0
    %589 = vmatprep.subr.mxu0 0.0
    %590 = vmatpush1.msra.mxu0 0.0
    %591 = vmatprep.subr.mxu0 0.0
    %592 = vmatpush1.msra.mxu0 0.0
    %593 = vmatprep.subr.mxu0 0.0
    %594 = vmatpush1.msra.mxu0 0.0
    %595 = vmatprep.subr.mxu0 0.0
    %596 = vmatpush1.msra.mxu0 0.0
    %597 = vmatprep.subr.mxu0 0.0
    %598 = vmatpush1.msra.mxu0 0.0
    %599 = vmatprep.subr.mxu0 0.0
    %600 = vmatpush1.msra.mxu0 0.0
    %601 = vmatprep.subr.mxu0 0.0
    %602 = vmatpush1.msra.mxu0 0.0
    %603 = vmatprep.subr.mxu0 0.0
    %604 = vmatpush1.msra.mxu0 0.0
    %605 = vmatprep.subr.mxu0 0.0
    %606 = vmatpush1.msra.mxu0 0.0
    %607 = vmatprep.subr.mxu0 0.0
    %608 = vmatpush1.msra.mxu0 0.0
    %609 = vmatprep.mubr.f32.mxu0 0.0
    %v610 = vand.u32 %v54, 4294901760
    %611 = vmatmul.mubr.f32.gmra.mrb[0].mxu0 %v610
    %v612 = vpop.f32.mrb[0].mxu0
    %v613 = vadd.f32 %v494, %v612
    %v614 = vpop.f32.mrb[0].mxu0
    %615 = vmatprep.mubr.f32.mxu0 0.0
    %v616 = vand.u32 %v57, 4294901760
    %617 = vmatmul.mubr.f32.gmra.mrb[0].mxu0 %v616
    %v618 = vpop.f32.mrb[0].mxu0
    %v619 = vadd.f32 %v502, %v618
    %v620 = vpop.f32.mrb[0].mxu0
    %621 = vmatprep.mubr.f32.mxu0 0.0
    %v622 = vand.u32 %v60, 4294901760
    %623 = vmatmul.mubr.f32.gmra.mrb[0].mxu0 %v622
    %v624 = vpop.f32.mrb[0].mxu0
    %v625 = vadd.f32 %v510, %v624
    %v626 = vpop.f32.mrb[0].mxu0
    %627 = vmatprep.mubr.f32.mxu0 0.0
    %v628 = vand.u32 %v63, 4294901760
    %629 = vmatmul.mubr.f32.gmra.mrb[0].mxu0 %v628
    %v630 = vpop.f32.mrb[0].mxu0
    %v631 = vadd.f32 %v518, %v630
    %v632 = vpop.f32.mrb[0].mxu0
    %633 = vdwg.mxu0
    %634 = vmatprep.subr.mxu0 0.0
    %v635 = vand.u32 %v44, 4294901760
    %636 = vmatpush1.msra.mxu0 %v635
    %637 = vmatprep.subr.mxu0 0.0
    %v638 = vand.u32 %v45, 4294901760
    %639 = vmatpush1.msra.mxu0 %v638
    %640 = vmatprep.subr.mxu0 0.0
    %v641 = vand.u32 %v46, 4294901760
    %642 = vmatpush1.msra.mxu0 %v641
    %643 = vmatprep.subr.mxu0 0.0
    %v644 = vand.u32 %v47, 4294901760
    %645 = vmatpush1.msra.mxu0 %v644
    %646 = vmatprep.subr.mxu0 0.0
    %v647 = vand.u32 %v48, 4294901760
    %648 = vmatpush1.msra.mxu0 %v647
    %649 = vmatprep.subr.mxu0 0.0
    %v650 = vand.u32 %v49, 4294901760
    %651 = vmatpush1.msra.mxu0 %v650
    %652 = vmatprep.subr.mxu0 0.0
    %v653 = vand.u32 %v50, 4294901760
    %654 = vmatpush1.msra.mxu0 %v653
    %655 = vmatprep.subr.mxu0 0.0
    %v656 = vand.u32 %v51, 4294901760
    %657 = vmatpush1.msra.mxu0 %v656
    %658 = vmatprep.subr.mxu0 0.0
    %659 = vmatpush1.msra.mxu0 0.0
    %660 = vmatprep.subr.mxu0 0.0
    %661 = vmatpush1.msra.mxu0 0.0
    %662 = vmatprep.subr.mxu0 0.0
    %663 = vmatpush1.msra.mxu0 0.0
    %664 = vmatprep.subr.mxu0 0.0
    %665 = vmatpush1.msra.mxu0 0.0
    %666 = vmatprep.subr.mxu0 0.0
    %667 = vmatpush1.msra.mxu0 0.0
    %668 = vmatprep.subr.mxu0 0.0
    %669 = vmatpush1.msra.mxu0 0.0
    %670 = vmatprep.subr.mxu0 0.0
    %671 = vmatpush1.msra.mxu0 0.0
    %672 = vmatprep.subr.mxu0 0.0
    %673 = vmatpush1.msra.mxu0 0.0
    %674 = vmatprep.subr.mxu0 0.0
    %675 = vmatpush1.msra.mxu0 0.0
    %676 = vmatprep.subr.mxu0 0.0
    %677 = vmatpush1.msra.mxu0 0.0
    %678 = vmatprep.subr.mxu0 0.0
    %679 = vmatpush1.msra.mxu0 0.0
    %680 = vmatprep.subr.mxu0 0.0
    %681 = vmatpush1.msra.mxu0 0.0
    %682 = vmatprep.subr.mxu0 0.0
    %683 = vmatpush1.msra.mxu0 0.0
    %684 = vmatprep.subr.mxu0 0.0
    %685 = vmatpush1.msra.mxu0 0.0
    %686 = vmatprep.subr.mxu0 0.0
    %687 = vmatpush1.msra.mxu0 0.0
    %688 = vmatprep.subr.mxu0 0.0
    %689 = vmatpush1.msra.mxu0 0.0
    %690 = vmatprep.subr.mxu0 0.0
    %691 = vmatpush1.msra.mxu0 0.0
    %692 = vmatprep.subr.mxu0 0.0
    %693 = vmatpush1.msra.mxu0 0.0
    %694 = vmatprep.subr.mxu0 0.0
    %695 = vmatpush1.msra.mxu0 0.0
    %696 = vmatprep.subr.mxu0 0.0
    %697 = vmatpush1.msra.mxu0 0.0
    %698 = vmatprep.subr.mxu0 0.0
    %699 = vmatpush1.msra.mxu0 0.0
    %700 = vmatprep.subr.mxu0 0.0
    %701 = vmatpush1.msra.mxu0 0.0
    %702 = vmatprep.subr.mxu0 0.0
    %703 = vmatpush1.msra.mxu0 0.0
    %704 = vmatprep.subr.mxu0 0.0
    %705 = vmatpush1.msra.mxu0 0.0
    %706 = vmatprep.mubr.f32.mxu0 0.0
    %v707 = vand.u32 %v54, 4294901760
    %708 = vmatmul.mubr.f32.gmra.mrb[0].mxu0 %v707
    %v709 = vpop.f32.mrb[0].mxu0
    %v710 = vadd.f32 %v613, %v709
    %v711 = vpop.f32.mrb[0].mxu0
    %712 = vmatprep.mubr.f32.mxu0 0.0
    %v713 = vand.u32 %v57, 4294901760
    %714 = vmatmul.mubr.f32.gmra.mrb[0].mxu0 %v713
    %v715 = vpop.f32.mrb[0].mxu0
    %v716 = vadd.f32 %v619, %v715
    %v717 = vpop.f32.mrb[0].mxu0
    %718 = vmatprep.mubr.f32.mxu0 0.0
    %v719 = vand.u32 %v60, 4294901760
    %720 = vmatmul.mubr.f32.gmra.mrb[0].mxu0 %v719
    %v721 = vpop.f32.mrb[0].mxu0
    %v722 = vadd.f32 %v625, %v721
    %v723 = vpop.f32.mrb[0].mxu0
    %724 = vmatprep.mubr.f32.mxu0 0.0
    %v725 = vand.u32 %v63, 4294901760
    %726 = vmatmul.mubr.f32.gmra.mrb[0].mxu0 %v725
    %v727 = vpop.f32.mrb[0].mxu0
    %v728 = vadd.f32 %v631, %v727
    %v729 = vpop.f32.mrb[0].mxu0
    %730 = vdwg.mxu0
    %731 = vst.msk [vmem:[#allocation7] sm:$0xff] %vm52, %v710
    %732 = vst.msk [vmem:[#allocation7 + $0x8] sm:$0xff] %vm52, %v716
    %733 = vst.msk [vmem:[#allocation7 + $0x10] sm:$0xff] %vm52, %v722
    %734 = vst.msk [vmem:[#allocation7 + $0x18] sm:$0xff] %vm52, %v728
    // Predicated region
    $region18: #{spectral_conv2d_forward.4} parent=1 // pred_check
      _
    $region19: #{spectral_conv2d_forward.4} parent=1 // pred_check_branch
      %736 = sbr.rel (0) target = $region21
    $region20: #{spectral_conv2d_forward.4} parent=1 // pred_region
      %s738 = ssub.s32 512, 512
      %739 = vsyncadd [#allocation4], %s738
      %s740 = sshll.u32 [#allocation7], 4
      %s741 = int_to_ptr.vmem [resolvable:$true] %s740
      %746 = dma.vmem_to_hbm [thread:$0]  %s741, 512, %s2, [#allocation4], 128, 128, 8
    $region21: #{spectral_conv2d_forward.4} parent=1 // pred_fallthru
      _
    // Predicated region
    $region22: #{spectral_conv2d_forward.4} parent=1 // pred_check
      _
    $region23: #{spectral_conv2d_forward.4} parent=1 // pred_check_branch
      %748 = sbr.rel (0) target = $region25
    $region24: #{spectral_conv2d_forward.4} parent=1 // pred_region
      %749 = dma.done [#allocation4], 512
    $region25: #{spectral_conv2d_forward.4} parent=1 // pred_fallthru
      _
    %750 = vsyncpa [#allocation3], 1
    %751 = vsyncpa [#allocation6], 1
    %752 = vsyncpa [#allocation4], 1

// kernel: spectral_conv2d_forward.5
$region0: #{spectral_conv2d_forward.5}
  #allocation0 [shape = 'u32[]', space=smem, size = 0x4, offset = 0x4, fixed_abs, tag = 'smem constant byte address 0x4 - core index']
  #allocation1 [shape = 'u32[144,128]{1,0:T(1,128)}', space=vmem, size = 0x12000, scoped, tag = 'internal scratch']
  %s0 = inlined_call_operand.hbm [shape: f32[512,4], index: 0, kind: input, shape index: {}]
  %s1 = inlined_call_operand.hbm [shape: f32[512,4], index: 1, kind: input, shape index: {}]
  %s2 = inlined_call_operand.hbm [shape: bf16[4,16], index: 2, kind: input, shape index: {}]
  %s3 = inlined_call_operand.hbm [shape: f32[1,16], index: 3, kind: input, shape index: {}]
  %s4 = inlined_call_operand.hbm [shape: bf16[16,4], index: 4, kind: input, shape index: {}]
  %s5 = inlined_call_operand.hbm [shape: f32[1,4], index: 5, kind: input, shape index: {}]
  %s6 = inlined_call_operand.hbm [shape: f32[512,4], index: 6, kind: output, shape index: {}]
  %s7 = sld [smem:[#allocation0]]
  $region58: #{spectral_conv2d_forward.5} parent=0
    _
  %s9 = ssub.s32 1, %s7
  %s10 = scalar_select 0, %s9, %s7
  $region1: #{spectral_conv2d_forward.5} parent=0
    #allocation2 [shape = 'u8[262144]{0}', space=vmem, size = 0x40000, scoped, tag = 'input window, operand 0, single buffered']
    #allocation3 [shape = 's32[1]{0}', space=sflag, size = 0x4, scoped, tag = 'scoped memory for spectral_conv2d_forward.5']
    #allocation4 [shape = 's32[1]{0}', space=sflag, size = 0x4, scoped, tag = 'scoped memory for spectral_conv2d_forward.5']
    #allocation5 [shape = 'u8[262144]{0}', space=vmem, size = 0x40000, scoped, tag = 'input window, operand 1, single buffered']
    #allocation6 [shape = 's32[1]{0}', space=sflag, size = 0x4, scoped, tag = 'scoped memory for spectral_conv2d_forward.5']
    #allocation7 [shape = 'u8[1024]{0}', space=vmem, size = 0x400, scoped, tag = 'input window, operand 2, single buffered']
    #allocation8 [shape = 'u8[512]{0}', space=vmem, size = 0x400, scoped, tag = 'input window, operand 3, single buffered']
    #allocation9 [shape = 's32[1]{0}', space=sflag, size = 0x4, scoped, tag = 'scoped memory for spectral_conv2d_forward.5']
    #allocation10 [shape = 'u8[4096]{0}', space=vmem, size = 0x1000, scoped, tag = 'input window, operand 4, single buffered']
    #allocation11 [shape = 'u8[512]{0}', space=vmem, size = 0x400, scoped, tag = 'input window, operand 5, single buffered']
    #allocation12 [shape = 's32[1]{0}', space=sflag, size = 0x4, scoped, tag = 'scoped memory for spectral_conv2d_forward.5']
    #allocation13 [shape = 'u8[262144]{0}', space=vmem, size = 0x40000, scoped, tag = 'output window, operand 0, single buffered']
    %11 = vsyncpa [#allocation3], 0
    %12 = vsyncpa [#allocation6], 0
    %13 = vsyncpa [#allocation9], 0
    %14 = vsyncpa [#allocation12], 0
    %15 = vsyncpa [#allocation4], 0
    // Predicated region
    $region2: #{spectral_conv2d_forward.5} parent=1 // pred_check
      _
    $region3: #{spectral_conv2d_forward.5} parent=1 // pred_check_branch
      %17 = sbr.rel (0) target = $region5
    $region4: #{spectral_conv2d_forward.5} parent=1 // pred_region
      %s19 = ssub.s32 8192, 8192
      %20 = vsyncadd [#allocation3], %s19
      %s21 = sshll.u32 [#allocation2], 4
      %s22 = int_to_ptr.vmem [resolvable:$true] %s21
      %27 = dma.hbm_to_vmem [thread:$0]  %s0, 8192, %s22, [#allocation3], 128, 128, 8
    $region5: #{spectral_conv2d_forward.5} parent=1 // pred_fallthru
      _
    // Predicated region
    $region6: #{spectral_conv2d_forward.5} parent=1 // pred_check
      _
    $region7: #{spectral_conv2d_forward.5} parent=1 // pred_check_branch
      %29 = sbr.rel (0) target = $region9
    $region8: #{spectral_conv2d_forward.5} parent=1 // pred_region
      %s31 = ssub.s32 8192, 8192
      %32 = vsyncadd [#allocation6], %s31
      %s33 = sshll.u32 [#allocation5], 4
      %s34 = int_to_ptr.vmem [resolvable:$true] %s33
      %39 = dma.hbm_to_vmem [thread:$0]  %s1, 8192, %s34, [#allocation6], 128, 128, 8
    $region9: #{spectral_conv2d_forward.5} parent=1 // pred_fallthru
      _
    // Predicated region
    $region10: #{spectral_conv2d_forward.5} parent=1 // pred_check
      _
    $region11: #{spectral_conv2d_forward.5} parent=1 // pred_check_branch
      %41 = sbr.rel (0) target = $region13
    $region12: #{spectral_conv2d_forward.5} parent=1 // pred_region
      %s43 = ssub.s32 32, 32
      %44 = vsyncadd [#allocation6], %s43
      %s46 = sshll.u32 [#allocation7], 4
      %s47 = int_to_ptr.vmem [resolvable:$true] %s46
      %49 = dma.hbm_to_vmem [thread:$0]  %s2, 32, %s47, [#allocation6]
    $region13: #{spectral_conv2d_forward.5} parent=1 // pred_fallthru
      _
    // Predicated region
    $region14: #{spectral_conv2d_forward.5} parent=1 // pred_check
      _
    $region15: #{spectral_conv2d_forward.5} parent=1 // pred_check_branch
      %51 = sbr.rel (0) target = $region17
    $region16: #{spectral_conv2d_forward.5} parent=1 // pred_region
      %s53 = ssub.s32 16, 16
      %54 = vsyncadd [#allocation9], %s53
      %s56 = sshll.u32 [#allocation8], 4
      %s57 = int_to_ptr.vmem [resolvable:$true] %s56
      %59 = dma.hbm_to_vmem [thread:$0]  %s3, 16, %s57, [#allocation9]
    $region17: #{spectral_conv2d_forward.5} parent=1 // pred_fallthru
      _
    // Predicated region
    $region18: #{spectral_conv2d_forward.5} parent=1 // pred_check
      _
    $region19: #{spectral_conv2d_forward.5} parent=1 // pred_check_branch
      %61 = sbr.rel (0) target = $region21
    $region20: #{spectral_conv2d_forward.5} parent=1 // pred_region
      %s63 = ssub.s32 128, 128
      %64 = vsyncadd [#allocation9], %s63
      %s65 = sshll.u32 [#allocation10], 4
      %s66 = int_to_ptr.vmem [resolvable:$true] %s65
      %71 = dma.hbm_to_vmem [thread:$0]  %s4, 128, %s66, [#allocation9], 64, 64, 4
    $region21: #{spectral_conv2d_forward.5} parent=1 // pred_fallthru
      _
    // Predicated region
    $region22: #{spectral_conv2d_forward.5} parent=1 // pred_check
      _
    $region23: #{spectral_conv2d_forward.5} parent=1 // pred_check_branch
      %73 = sbr.rel (0) target = $region25
    $region24: #{spectral_conv2d_forward.5} parent=1 // pred_region
      %s75 = ssub.s32 16, 16
      %76 = vsyncadd [#allocation12], %s75
      %s78 = sshll.u32 [#allocation11], 4
      %s79 = int_to_ptr.vmem [resolvable:$true] %s78
      %81 = dma.hbm_to_vmem [thread:$0]  %s5, 16, %s79, [#allocation12]
    $region25: #{spectral_conv2d_forward.5} parent=1 // pred_fallthru
      _
    // Predicated region
    $region26: #{spectral_conv2d_forward.5} parent=1 // pred_check
      _
    $region27: #{spectral_conv2d_forward.5} parent=1 // pred_check_branch
      %83 = sbr.rel (0) target = $region29
    $region28: #{spectral_conv2d_forward.5} parent=1 // pred_region
      %84 = dma.done [#allocation3], 8192
    $region29: #{spectral_conv2d_forward.5} parent=1 // pred_fallthru
      _
    // Predicated region
    $region30: #{spectral_conv2d_forward.5} parent=1 // pred_check
      _
    $region31: #{spectral_conv2d_forward.5} parent=1 // pred_check_branch
      %86 = sbr.rel (0) target = $region33
    $region32: #{spectral_conv2d_forward.5} parent=1 // pred_region
      %87 = dma.done [#allocation6], 8192
    $region33: #{spectral_conv2d_forward.5} parent=1 // pred_fallthru
      _
    // Predicated region
    $region34: #{spectral_conv2d_forward.5} parent=1 // pred_check
      _
    $region35: #{spectral_conv2d_forward.5} parent=1 // pred_check_branch
      %89 = sbr.rel (0) target = $region37
    $region36: #{spectral_conv2d_forward.5} parent=1 // pred_region
      %90 = dma.done [#allocation6], 32
    $region37: #{spectral_conv2d_forward.5} parent=1 // pred_fallthru
      _
    // Predicated region
    $region38: #{spectral_conv2d_forward.5} parent=1 // pred_check
      _
    $region39: #{spectral_conv2d_forward.5} parent=1 // pred_check_branch
      %92 = sbr.rel (0) target = $region41
    $region40: #{spectral_conv2d_forward.5} parent=1 // pred_region
      %93 = dma.done [#allocation9], 16
    $region41: #{spectral_conv2d_forward.5} parent=1 // pred_fallthru
      _
    // Predicated region
    $region42: #{spectral_conv2d_forward.5} parent=1 // pred_check
      _
    $region43: #{spectral_conv2d_forward.5} parent=1 // pred_check_branch
      %95 = sbr.rel (0) target = $region45
    $region44: #{spectral_conv2d_forward.5} parent=1 // pred_region
      %96 = dma.done [#allocation9], 128
    $region45: #{spectral_conv2d_forward.5} parent=1 // pred_fallthru
      _
    // Predicated region
    $region46: #{spectral_conv2d_forward.5} parent=1 // pred_check
      _
    $region47: #{spectral_conv2d_forward.5} parent=1 // pred_check_branch
      %98 = sbr.rel (0) target = $region49
    $region48: #{spectral_conv2d_forward.5} parent=1 // pred_region
      %99 = dma.done [#allocation12], 16
    $region49: #{spectral_conv2d_forward.5} parent=1 // pred_fallthru
      _
    %v101 = vld [vmem:[#allocation2] sm:$0xff]
    %v102 = vld [vmem:[#allocation2 + $0x8] sm:$0xff]
    %v103 = vld [vmem:[#allocation2 + $0x10] sm:$0xff]
    %v104 = vld [vmem:[#allocation2 + $0x18] sm:$0xff]
    %v105 = vld [vmem:[#allocation2 + $0x20] sm:$0xff]
    %v106 = vld [vmem:[#allocation2 + $0x28] sm:$0xff]
    %v107 = vld [vmem:[#allocation2 + $0x30] sm:$0xff]
    %v108 = vld [vmem:[#allocation2 + $0x38] sm:$0xff]
    %v109 = vld [vmem:[#allocation2 + $0x40] sm:$0xff]
    %v110 = vld [vmem:[#allocation2 + $0x48] sm:$0xff]
    %v111 = vld [vmem:[#allocation2 + $0x50] sm:$0xff]
    %v112 = vld [vmem:[#allocation2 + $0x58] sm:$0xff]
    %v113 = vld [vmem:[#allocation2 + $0x60] sm:$0xff]
    %v114 = vld [vmem:[#allocation2 + $0x68] sm:$0xff]
    %v115 = vld [vmem:[#allocation2 + $0x70] sm:$0xff]
    %v116 = vld [vmem:[#allocation2 + $0x78] sm:$0xff]
    %v117 = vld [vmem:[#allocation2 + $0x80] sm:$0xff]
    %v118 = vld [vmem:[#allocation2 + $0x88] sm:$0xff]
    %v119 = vld [vmem:[#allocation2 + $0x90] sm:$0xff]
    %v120 = vld [vmem:[#allocation2 + $0x98] sm:$0xff]
    %v121 = vld [vmem:[#allocation2 + $0xa0] sm:$0xff]
    %v122 = vld [vmem:[#allocation2 + $0xa8] sm:$0xff]
    %v123 = vld [vmem:[#allocation2 + $0xb0] sm:$0xff]
    %v124 = vld [vmem:[#allocation2 + $0xb8] sm:$0xff]
    %v125 = vld [vmem:[#allocation2 + $0xc0] sm:$0xff]
    %v126 = vld [vmem:[#allocation2 + $0xc8] sm:$0xff]
    %v127 = vld [vmem:[#allocation2 + $0xd0] sm:$0xff]
    %v128 = vld [vmem:[#allocation2 + $0xd8] sm:$0xff]
    %v129 = vld [vmem:[#allocation2 + $0xe0] sm:$0xff]
    %v130 = vld [vmem:[#allocation2 + $0xe8] sm:$0xff]
    %v131 = vld [vmem:[#allocation2 + $0xf0] sm:$0xff]
    %v132 = vld [vmem:[#allocation2 + $0xf8] sm:$0xff]
    %v133 = vld [vmem:[#allocation2 + $0x100] sm:$0xff]
    %v134 = vld [vmem:[#allocation2 + $0x108] sm:$0xff]
    %v135 = vld [vmem:[#allocation2 + $0x110] sm:$0xff]
    %v136 = vld [vmem:[#allocation2 + $0x118] sm:$0xff]
    %v137 = vld [vmem:[#allocation2 + $0x120] sm:$0xff]
    %v138 = vld [vmem:[#allocation2 + $0x128] sm:$0xff]
    %v139 = vld [vmem:[#allocation2 + $0x130] sm:$0xff]
    %v140 = vld [vmem:[#allocation2 + $0x138] sm:$0xff]
    %v141 = vld [vmem:[#allocation2 + $0x140] sm:$0xff]
    %v142 = vld [vmem:[#allocation2 + $0x148] sm:$0xff]
    %v143 = vld [vmem:[#allocation2 + $0x150] sm:$0xff]
    %v144 = vld [vmem:[#allocation2 + $0x158] sm:$0xff]
    %v145 = vld [vmem:[#allocation2 + $0x160] sm:$0xff]
    %v146 = vld [vmem:[#allocation2 + $0x168] sm:$0xff]
    %v147 = vld [vmem:[#allocation2 + $0x170] sm:$0xff]
    %v148 = vld [vmem:[#allocation2 + $0x178] sm:$0xff]
    %v149 = vld [vmem:[#allocation2 + $0x180] sm:$0xff]
    %v150 = vld [vmem:[#allocation2 + $0x188] sm:$0xff]
    %v151 = vld [vmem:[#allocation2 + $0x190] sm:$0xff]
    %v152 = vld [vmem:[#allocation2 + $0x198] sm:$0xff]
    %v153 = vld [vmem:[#allocation2 + $0x1a0] sm:$0xff]
    %v154 = vld [vmem:[#allocation2 + $0x1a8] sm:$0xff]
    %v155 = vld [vmem:[#allocation2 + $0x1b0] sm:$0xff]
    %v156 = vld [vmem:[#allocation2 + $0x1b8] sm:$0xff]
    %v157 = vld [vmem:[#allocation2 + $0x1c0] sm:$0xff]
    %v158 = vld [vmem:[#allocation2 + $0x1c8] sm:$0xff]
    %v159 = vld [vmem:[#allocation2 + $0x1d0] sm:$0xff]
    %v160 = vld [vmem:[#allocation2 + $0x1d8] sm:$0xff]
    %v161 = vld [vmem:[#allocation2 + $0x1e0] sm:$0xff]
    %v162 = vld [vmem:[#allocation2 + $0x1e8] sm:$0xff]
    %v163 = vld [vmem:[#allocation2 + $0x1f0] sm:$0xff]
    %v164 = vld [vmem:[#allocation2 + $0x1f8] sm:$0xff]
    %v165 = vld [vmem:[#allocation5] sm:$0xff]
    %v166 = vld [vmem:[#allocation5 + $0x8] sm:$0xff]
    %v167 = vld [vmem:[#allocation5 + $0x10] sm:$0xff]
    %v168 = vld [vmem:[#allocation5 + $0x18] sm:$0xff]
    %v169 = vld [vmem:[#allocation5 + $0x20] sm:$0xff]
    %v170 = vld [vmem:[#allocation5 + $0x28] sm:$0xff]
    %v171 = vld [vmem:[#allocation5 + $0x30] sm:$0xff]
    %v172 = vld [vmem:[#allocation5 + $0x38] sm:$0xff]
    %v173 = vld [vmem:[#allocation5 + $0x40] sm:$0xff]
    %v174 = vld [vmem:[#allocation5 + $0x48] sm:$0xff]
    %v175 = vld [vmem:[#allocation5 + $0x50] sm:$0xff]
    %v176 = vld [vmem:[#allocation5 + $0x58] sm:$0xff]
    %v177 = vld [vmem:[#allocation5 + $0x60] sm:$0xff]
    %v178 = vld [vmem:[#allocation5 + $0x68] sm:$0xff]
    %v179 = vld [vmem:[#allocation5 + $0x70] sm:$0xff]
    %v180 = vld [vmem:[#allocation5 + $0x78] sm:$0xff]
    %v181 = vld [vmem:[#allocation5 + $0x80] sm:$0xff]
    %v182 = vld [vmem:[#allocation5 + $0x88] sm:$0xff]
    %v183 = vld [vmem:[#allocation5 + $0x90] sm:$0xff]
    %v184 = vld [vmem:[#allocation5 + $0x98] sm:$0xff]
    %v185 = vld [vmem:[#allocation5 + $0xa0] sm:$0xff]
    %v186 = vld [vmem:[#allocation5 + $0xa8] sm:$0xff]
    %v187 = vld [vmem:[#allocation5 + $0xb0] sm:$0xff]
    %v188 = vld [vmem:[#allocation5 + $0xb8] sm:$0xff]
    %v189 = vld [vmem:[#allocation5 + $0xc0] sm:$0xff]
    %v190 = vld [vmem:[#allocation5 + $0xc8] sm:$0xff]
    %v191 = vld [vmem:[#allocation5 + $0xd0] sm:$0xff]
    %v192 = vld [vmem:[#allocation5 + $0xd8] sm:$0xff]
    %v193 = vld [vmem:[#allocation5 + $0xe0] sm:$0xff]
    %v194 = vld [vmem:[#allocation5 + $0xe8] sm:$0xff]
    %v195 = vld [vmem:[#allocation5 + $0xf0] sm:$0xff]
    %v196 = vld [vmem:[#allocation5 + $0xf8] sm:$0xff]
    %v197 = vld [vmem:[#allocation5 + $0x100] sm:$0xff]
    %v198 = vld [vmem:[#allocation5 + $0x108] sm:$0xff]
    %v199 = vld [vmem:[#allocation5 + $0x110] sm:$0xff]
    %v200 = vld [vmem:[#allocation5 + $0x118] sm:$0xff]
    %v201 = vld [vmem:[#allocation5 + $0x120] sm:$0xff]
    %v202 = vld [vmem:[#allocation5 + $0x128] sm:$0xff]
    %v203 = vld [vmem:[#allocation5 + $0x130] sm:$0xff]
    %v204 = vld [vmem:[#allocation5 + $0x138] sm:$0xff]
    %v205 = vld [vmem:[#allocation5 + $0x140] sm:$0xff]
    %v206 = vld [vmem:[#allocation5 + $0x148] sm:$0xff]
    %v207 = vld [vmem:[#allocation5 + $0x150] sm:$0xff]
    %v208 = vld [vmem:[#allocation5 + $0x158] sm:$0xff]
    %v209 = vld [vmem:[#allocation5 + $0x160] sm:$0xff]
    %v210 = vld [vmem:[#allocation5 + $0x168] sm:$0xff]
    %v211 = vld [vmem:[#allocation5 + $0x170] sm:$0xff]
    %v212 = vld [vmem:[#allocation5 + $0x178] sm:$0xff]
    %v213 = vld [vmem:[#allocation5 + $0x180] sm:$0xff]
    %v214 = vld [vmem:[#allocation5 + $0x188] sm:$0xff]
    %v215 = vld [vmem:[#allocation5 + $0x190] sm:$0xff]
    %v216 = vld [vmem:[#allocation5 + $0x198] sm:$0xff]
    %v217 = vld [vmem:[#allocation5 + $0x1a0] sm:$0xff]
    %v218 = vld [vmem:[#allocation5 + $0x1a8] sm:$0xff]
    %v219 = vld [vmem:[#allocation5 + $0x1b0] sm:$0xff]
    %v220 = vld [vmem:[#allocation5 + $0x1b8] sm:$0xff]
    %v221 = vld [vmem:[#allocation5 + $0x1c0] sm:$0xff]
    %v222 = vld [vmem:[#allocation5 + $0x1c8] sm:$0xff]
    %v223 = vld [vmem:[#allocation5 + $0x1d0] sm:$0xff]
    %v224 = vld [vmem:[#allocation5 + $0x1d8] sm:$0xff]
    %v225 = vld [vmem:[#allocation5 + $0x1e0] sm:$0xff]
    %v226 = vld [vmem:[#allocation5 + $0x1e8] sm:$0xff]
    %v227 = vld [vmem:[#allocation5 + $0x1f0] sm:$0xff]
    %v228 = vld [vmem:[#allocation5 + $0x1f8] sm:$0xff]
    %v229 = vadd.f32 %v101, %v165
    %v230 = vadd.f32 %v102, %v166
    %v231 = vadd.f32 %v103, %v167
    %v232 = vadd.f32 %v104, %v168
    %v233 = vadd.f32 %v105, %v169
    %v234 = vadd.f32 %v106, %v170
    %v235 = vadd.f32 %v107, %v171
    %v236 = vadd.f32 %v108, %v172
    %v237 = vadd.f32 %v109, %v173
    %v238 = vadd.f32 %v110, %v174
    %v239 = vadd.f32 %v111, %v175
    %v240 = vadd.f32 %v112, %v176
    %v241 = vadd.f32 %v113, %v177
    %v242 = vadd.f32 %v114, %v178
    %v243 = vadd.f32 %v115, %v179
    %v244 = vadd.f32 %v116, %v180
    %v245 = vadd.f32 %v117, %v181
    %v246 = vadd.f32 %v118, %v182
    %v247 = vadd.f32 %v119, %v183
    %v248 = vadd.f32 %v120, %v184
    %v249 = vadd.f32 %v121, %v185
    %v250 = vadd.f32 %v122, %v186
    %v251 = vadd.f32 %v123, %v187
    %v252 = vadd.f32 %v124, %v188
    %v253 = vadd.f32 %v125, %v189
    %v254 = vadd.f32 %v126, %v190
    %v255 = vadd.f32 %v127, %v191
    %v256 = vadd.f32 %v128, %v192
    %v257 = vadd.f32 %v129, %v193
    %v258 = vadd.f32 %v130, %v194
    %v259 = vadd.f32 %v131, %v195
    %v260 = vadd.f32 %v132, %v196
    %v261 = vadd.f32 %v133, %v197
    %v262 = vadd.f32 %v134, %v198
    %v263 = vadd.f32 %v135, %v199
    %v264 = vadd.f32 %v136, %v200
    %v265 = vadd.f32 %v137, %v201
    %v266 = vadd.f32 %v138, %v202
    %v267 = vadd.f32 %v139, %v203
    %v268 = vadd.f32 %v140, %v204
    %v269 = vadd.f32 %v141, %v205
    %v270 = vadd.f32 %v142, %v206
    %v271 = vadd.f32 %v143, %v207
    %v272 = vadd.f32 %v144, %v208
    %v273 = vadd.f32 %v145, %v209
    %v274 = vadd.f32 %v146, %v210
    %v275 = vadd.f32 %v147, %v211
    %v276 = vadd.f32 %v148, %v212
    %v277 = vadd.f32 %v149, %v213
    %v278 = vadd.f32 %v150, %v214
    %v279 = vadd.f32 %v151, %v215
    %v280 = vadd.f32 %v152, %v216
    %v281 = vadd.f32 %v153, %v217
    %v282 = vadd.f32 %v154, %v218
    %v283 = vadd.f32 %v155, %v219
    %v284 = vadd.f32 %v156, %v220
    %v285 = vadd.f32 %v157, %v221
    %v286 = vadd.f32 %v158, %v222
    %v287 = vadd.f32 %v159, %v223
    %v288 = vadd.f32 %v160, %v224
    %v289 = vadd.f32 %v161, %v225
    %v290 = vadd.f32 %v162, %v226
    %v291 = vadd.f32 %v163, %v227
    %v292 = vadd.f32 %v164, %v228
    %v293 = vpack.c.bf16 %v230, %v229
    %v294 = vpack.c.bf16 %v232, %v231
    %v295 = vpack.c.bf16 %v234, %v233
    %v296 = vpack.c.bf16 %v236, %v235
    %v297 = vpack.c.bf16 %v238, %v237
    %v298 = vpack.c.bf16 %v240, %v239
    %v299 = vpack.c.bf16 %v242, %v241
    %v300 = vpack.c.bf16 %v244, %v243
    %v301 = vpack.c.bf16 %v246, %v245
    %v302 = vpack.c.bf16 %v248, %v247
    %v303 = vpack.c.bf16 %v250, %v249
    %v304 = vpack.c.bf16 %v252, %v251
    %v305 = vpack.c.bf16 %v254, %v253
    %v306 = vpack.c.bf16 %v256, %v255
    %v307 = vpack.c.bf16 %v258, %v257
    %v308 = vpack.c.bf16 %v260, %v259
    %v309 = vpack.c.bf16 %v262, %v261
    %v310 = vpack.c.bf16 %v264, %v263
    %v311 = vpack.c.bf16 %v266, %v265
    %v312 = vpack.c.bf16 %v268, %v267
    %v313 = vpack.c.bf16 %v270, %v269
    %v314 = vpack.c.bf16 %v272, %v271
    %v315 = vpack.c.bf16 %v274, %v273
    %v316 = vpack.c.bf16 %v276, %v275
    %v317 = vpack.c.bf16 %v278, %v277
    %v318 = vpack.c.bf16 %v280, %v279
    %v319 = vpack.c.bf16 %v282, %v281
    %v320 = vpack.c.bf16 %v284, %v283
    %v321 = vpack.c.bf16 %v286, %v285
    %v322 = vpack.c.bf16 %v288, %v287
    %v323 = vpack.c.bf16 %v290, %v289
    %v324 = vpack.c.bf16 %v292, %v291
    %v325 = vld [vmem:[#allocation7] sm:$0x3]
    %v326 = vld [vmem:[#allocation8] sm:$0x1]
    %v328 = vlaneseq
    %v329 = vshrl.u32 %v328, 7
    %v330 = vsub.s32 0, %v329
    %v331 = vrot.slane %v326, %v330
    %vm333 = vcmask 31744
    %v335 = vsel %vm333, %v293, 0
    %v338 = vsel %vm333, %v294, 0
    %v341 = vsel %vm333, %v295, 0
    %v344 = vsel %vm333, %v296, 0
    %v347 = vsel %vm333, %v297, 0
    %v350 = vsel %vm333, %v298, 0
    %v353 = vsel %vm333, %v299, 0
    %v356 = vsel %vm333, %v300, 0
    %v359 = vsel %vm333, %v301, 0
    %v362 = vsel %vm333, %v302, 0
    %v365 = vsel %vm333, %v303, 0
    %v368 = vsel %vm333, %v304, 0
    %v371 = vsel %vm333, %v305, 0
    %v374 = vsel %vm333, %v306, 0
    %v377 = vsel %vm333, %v307, 0
    %v380 = vsel %vm333, %v308, 0
    %v383 = vsel %vm333, %v309, 0
    %v386 = vsel %vm333, %v310, 0
    %v389 = vsel %vm333, %v311, 0
    %v392 = vsel %vm333, %v312, 0
    %v395 = vsel %vm333, %v313, 0
    %v398 = vsel %vm333, %v314, 0
    %v401 = vsel %vm333, %v315, 0
    %v404 = vsel %vm333, %v316, 0
    %v407 = vsel %vm333, %v317, 0
    %v410 = vsel %vm333, %v318, 0
    %v413 = vsel %vm333, %v319, 0
    %v416 = vsel %vm333, %v320, 0
    %v419 = vsel %vm333, %v321, 0
    %v422 = vsel %vm333, %v322, 0
    %v425 = vsel %vm333, %v323, 0
    %v428 = vsel %vm333, %v324, 0
    %vm430 = vcmask 1041408
    %v432 = vsel %vm430, %v325, 0
    %434 = vmatprep.subr.bf16.mxu0 0
    %435 = vmatpush1.bf16.msra.mxu0 %v432
    %436 = vmatprep.subr.bf16.mxu0 0
    %437 = vmatpush1.bf16.msra.mxu0 0
    %438 = vmatprep.subr.bf16.mxu0 0
    %439 = vmatpush1.bf16.msra.mxu0 0
    %440 = vmatprep.subr.bf16.mxu0 0
    %441 = vmatpush1.bf16.msra.mxu0 0
    %442 = vmatprep.subr.bf16.mxu0 0
    %443 = vmatpush1.bf16.msra.mxu0 0
    %444 = vmatprep.subr.bf16.mxu0 0
    %445 = vmatpush1.bf16.msra.mxu0 0
    %446 = vmatprep.subr.bf16.mxu0 0
    %447 = vmatpush1.bf16.msra.mxu0 0
    %448 = vmatprep.subr.bf16.mxu0 0
    %449 = vmatpush1.bf16.msra.mxu0 0
    %450 = vmatprep.subr.bf16.mxu0 0
    %451 = vmatpush1.bf16.msra.mxu0 0
    %452 = vmatprep.subr.bf16.mxu0 0
    %453 = vmatpush1.bf16.msra.mxu0 0
    %454 = vmatprep.subr.bf16.mxu0 0
    %455 = vmatpush1.bf16.msra.mxu0 0
    %456 = vmatprep.subr.bf16.mxu0 0
    %457 = vmatpush1.bf16.msra.mxu0 0
    %458 = vmatprep.subr.bf16.mxu0 0
    %459 = vmatpush1.bf16.msra.mxu0 0
    %460 = vmatprep.subr.bf16.mxu0 0
    %461 = vmatpush1.bf16.msra.mxu0 0
    %462 = vmatprep.subr.bf16.mxu0 0
    %463 = vmatpush1.bf16.msra.mxu0 0
    %464 = vmatprep.subr.bf16.mxu0 0
    %465 = vmatpush1.bf16.msra.mxu0 0
    %466 = vmatprep.mubr.bf16.mxu0 0
    %467 = vmatmul.mubr.bf16.gmra.mrb[0].mxu0 %v335
    %v468 = vpop.f32.mrb[0].mxu0
    %v469 = vadd.f32 %v331, %v468
    %v470 = vpop.f32.mrb[0].mxu0
    %v471 = vpop.f32.mrb[0].mxu0
    %v472 = vadd.f32 %v331, %v471
    %v473 = vpop.f32.mrb[0].mxu0
    %474 = vmatprep.mubr.bf16.mxu0 0
    %475 = vmatmul.mubr.bf16.gmra.mrb[0].mxu0 %v338
    %v476 = vpop.f32.mrb[0].mxu0
    %v477 = vadd.f32 %v331, %v476
    %v478 = vpop.f32.mrb[0].mxu0
    %v479 = vpop.f32.mrb[0].mxu0
    %v480 = vadd.f32 %v331, %v479
    %v481 = vpop.f32.mrb[0].mxu0
    %482 = vmatprep.mubr.bf16.mxu0 0
    %483 = vmatmul.mubr.bf16.gmra.mrb[0].mxu0 %v341
    %v484 = vpop.f32.mrb[0].mxu0
    %v485 = vadd.f32 %v331, %v484
    %v486 = vpop.f32.mrb[0].mxu0
    %v487 = vpop.f32.mrb[0].mxu0
    %v488 = vadd.f32 %v331, %v487
    %v489 = vpop.f32.mrb[0].mxu0
    %490 = vmatprep.mubr.bf16.mxu0 0
    %491 = vmatmul.mubr.bf16.gmra.mrb[0].mxu0 %v344
    %v492 = vpop.f32.mrb[0].mxu0
    %v493 = vadd.f32 %v331, %v492
    %v494 = vpop.f32.mrb[0].mxu0
    %v495 = vpop.f32.mrb[0].mxu0
    %v496 = vadd.f32 %v331, %v495
    %v497 = vpop.f32.mrb[0].mxu0
    %498 = vmatprep.mubr.bf16.mxu0 0
    %499 = vmatmul.mubr.bf16.gmra.mrb[0].mxu0 %v347
    %v500 = vpop.f32.mrb[0].mxu0
    %v501 = vadd.f32 %v331, %v500
    %v502 = vpop.f32.mrb[0].mxu0
    %v503 = vpop.f32.mrb[0].mxu0
    %v504 = vadd.f32 %v331, %v503
    %v505 = vpop.f32.mrb[0].mxu0
    %506 = vmatprep.mubr.bf16.mxu0 0
    %507 = vmatmul.mubr.bf16.gmra.mrb[0].mxu0 %v350
    %v508 = vpop.f32.mrb[0].mxu0
    %v509 = vadd.f32 %v331, %v508
    %v510 = vpop.f32.mrb[0].mxu0
    %v511 = vpop.f32.mrb[0].mxu0
    %v512 = vadd.f32 %v331, %v511
    %v513 = vpop.f32.mrb[0].mxu0
    %514 = vmatprep.mubr.bf16.mxu0 0
    %515 = vmatmul.mubr.bf16.gmra.mrb[0].mxu0 %v353
    %v516 = vpop.f32.mrb[0].mxu0
    %v517 = vadd.f32 %v331, %v516
    %v518 = vpop.f32.mrb[0].mxu0
    %v519 = vpop.f32.mrb[0].mxu0
    %v520 = vadd.f32 %v331, %v519
    %v521 = vpop.f32.mrb[0].mxu0
    %522 = vmatprep.mubr.bf16.mxu0 0
    %523 = vmatmul.mubr.bf16.gmra.mrb[0].mxu0 %v356
    %v524 = vpop.f32.mrb[0].mxu0
    %v525 = vadd.f32 %v331, %v524
    %v526 = vpop.f32.mrb[0].mxu0
    %v527 = vpop.f32.mrb[0].mxu0
    %v528 = vadd.f32 %v331, %v527
    %v529 = vpop.f32.mrb[0].mxu0
    %530 = vmatprep.mubr.bf16.mxu0 0
    %531 = vmatmul.mubr.bf16.gmra.mrb[0].mxu0 %v359
    %v532 = vpop.f32.mrb[0].mxu0
    %v533 = vadd.f32 %v331, %v532
    %v534 = vpop.f32.mrb[0].mxu0
    %v535 = vpop.f32.mrb[0].mxu0
    %v536 = vadd.f32 %v331, %v535
    %v537 = vpop.f32.mrb[0].mxu0
    %538 = vmatprep.mubr.bf16.mxu0 0
    %539 = vmatmul.mubr.bf16.gmra.mrb[0].mxu0 %v362
    %v540 = vpop.f32.mrb[0].mxu0
    %v541 = vadd.f32 %v331, %v540
    %v542 = vpop.f32.mrb[0].mxu0
    %v543 = vpop.f32.mrb[0].mxu0
    %v544 = vadd.f32 %v331, %v543
    %v545 = vpop.f32.mrb[0].mxu0
    %546 = vmatprep.mubr.bf16.mxu0 0
    %547 = vmatmul.mubr.bf16.gmra.mrb[0].mxu0 %v365
    %v548 = vpop.f32.mrb[0].mxu0
    %v549 = vadd.f32 %v331, %v548
    %v550 = vpop.f32.mrb[0].mxu0
    %v551 = vpop.f32.mrb[0].mxu0
    %v552 = vadd.f32 %v331, %v551
    %v553 = vpop.f32.mrb[0].mxu0
    %554 = vmatprep.mubr.bf16.mxu0 0
    %555 = vmatmul.mubr.bf16.gmra.mrb[0].mxu0 %v368
    %v556 = vpop.f32.mrb[0].mxu0
    %v557 = vadd.f32 %v331, %v556
    %v558 = vpop.f32.mrb[0].mxu0
    %v559 = vpop.f32.mrb[0].mxu0
    %v560 = vadd.f32 %v331, %v559
    %v561 = vpop.f32.mrb[0].mxu0
    %562 = vmatprep.mubr.bf16.mxu0 0
    %563 = vmatmul.mubr.bf16.gmra.mrb[0].mxu0 %v371
    %v564 = vpop.f32.mrb[0].mxu0
    %v565 = vadd.f32 %v331, %v564
    %v566 = vpop.f32.mrb[0].mxu0
    %v567 = vpop.f32.mrb[0].mxu0
    %v568 = vadd.f32 %v331, %v567
    %v569 = vpop.f32.mrb[0].mxu0
    %570 = vmatprep.mubr.bf16.mxu0 0
    %571 = vmatmul.mubr.bf16.gmra.mrb[0].mxu0 %v374
    %v572 = vpop.f32.mrb[0].mxu0
    %v573 = vadd.f32 %v331, %v572
    %v574 = vpop.f32.mrb[0].mxu0
    %v575 = vpop.f32.mrb[0].mxu0
    %v576 = vadd.f32 %v331, %v575
    %v577 = vpop.f32.mrb[0].mxu0
    %578 = vmatprep.mubr.bf16.mxu0 0
    %579 = vmatmul.mubr.bf16.gmra.mrb[0].mxu0 %v377
    %v580 = vpop.f32.mrb[0].mxu0
    %v581 = vadd.f32 %v331, %v580
    %v582 = vpop.f32.mrb[0].mxu0
    %v583 = vpop.f32.mrb[0].mxu0
    %v584 = vadd.f32 %v331, %v583
    %v585 = vpop.f32.mrb[0].mxu0
    %586 = vmatprep.mubr.bf16.mxu0 0
    %587 = vmatmul.mubr.bf16.gmra.mrb[0].mxu0 %v380
    %v588 = vpop.f32.mrb[0].mxu0
    %v589 = vadd.f32 %v331, %v588
    %v590 = vpop.f32.mrb[0].mxu0
    %v591 = vpop.f32.mrb[0].mxu0
    %v592 = vadd.f32 %v331, %v591
    %v593 = vpop.f32.mrb[0].mxu0
    %594 = vmatprep.mubr.bf16.mxu0 0
    %595 = vmatmul.mubr.bf16.gmra.mrb[0].mxu0 %v383
    %v596 = vpop.f32.mrb[0].mxu0
    %v597 = vadd.f32 %v331, %v596
    %v598 = vpop.f32.mrb[0].mxu0
    %v599 = vpop.f32.mrb[0].mxu0
    %v600 = vadd.f32 %v331, %v599
    %v601 = vpop.f32.mrb[0].mxu0
    %602 = vmatprep.mubr.bf16.mxu0 0
    %603 = vmatmul.mubr.bf16.gmra.mrb[0].mxu0 %v386
    %v604 = vpop.f32.mrb[0].mxu0
    %v605 = vadd.f32 %v331, %v604
    %v606 = vpop.f32.mrb[0].mxu0
    %v607 = vpop.f32.mrb[0].mxu0
    %v608 = vadd.f32 %v331, %v607
    %v609 = vpop.f32.mrb[0].mxu0
    %610 = vmatprep.mubr.bf16.mxu0 0
    %611 = vmatmul.mubr.bf16.gmra.mrb[0].mxu0 %v389
    %v612 = vpop.f32.mrb[0].mxu0
    %v613 = vadd.f32 %v331, %v612
    %v614 = vpop.f32.mrb[0].mxu0
    %v615 = vpop.f32.mrb[0].mxu0
    %v616 = vadd.f32 %v331, %v615
    %v617 = vpop.f32.mrb[0].mxu0
    %618 = vmatprep.mubr.bf16.mxu0 0
    %619 = vmatmul.mubr.bf16.gmra.mrb[0].mxu0 %v392
    %v620 = vpop.f32.mrb[0].mxu0
    %v621 = vadd.f32 %v331, %v620
    %v622 = vpop.f32.mrb[0].mxu0
    %v623 = vpop.f32.mrb[0].mxu0
    %v624 = vadd.f32 %v331, %v623
    %v625 = vpop.f32.mrb[0].mxu0
    %626 = vmatprep.mubr.bf16.mxu0 0
    %627 = vmatmul.mubr.bf16.gmra.mrb[0].mxu0 %v395
    %v628 = vpop.f32.mrb[0].mxu0
    %v629 = vadd.f32 %v331, %v628
    %v630 = vpop.f32.mrb[0].mxu0
    %v631 = vpop.f32.mrb[0].mxu0
    %v632 = vadd.f32 %v331, %v631
    %v633 = vpop.f32.mrb[0].mxu0
    %634 = vmatprep.mubr.bf16.mxu0 0
    %635 = vmatmul.mubr.bf16.gmra.mrb[0].mxu0 %v398
    %v636 = vpop.f32.mrb[0].mxu0
    %v637 = vadd.f32 %v331, %v636
    %v638 = vpop.f32.mrb[0].mxu0
    %v639 = vpop.f32.mrb[0].mxu0
    %v640 = vadd.f32 %v331, %v639
    %v641 = vpop.f32.mrb[0].mxu0
    %642 = vmatprep.mubr.bf16.mxu0 0
    %643 = vmatmul.mubr.bf16.gmra.mrb[0].mxu0 %v401
    %v644 = vpop.f32.mrb[0].mxu0
    %v645 = vadd.f32 %v331, %v644
    %v646 = vpop.f32.mrb[0].mxu0
    %v647 = vpop.f32.mrb[0].mxu0
    %v648 = vadd.f32 %v331, %v647
    %v649 = vpop.f32.mrb[0].mxu0
    %650 = vmatprep.mubr.bf16.mxu0 0
    %651 = vmatmul.mubr.bf16.gmra.mrb[0].mxu0 %v404
    %v652 = vpop.f32.mrb[0].mxu0
    %v653 = vadd.f32 %v331, %v652
    %v654 = vpop.f32.mrb[0].mxu0
    %v655 = vpop.f32.mrb[0].mxu0
    %v656 = vadd.f32 %v331, %v655
    %v657 = vpop.f32.mrb[0].mxu0
    %658 = vmatprep.mubr.bf16.mxu0 0
    %659 = vmatmul.mubr.bf16.gmra.mrb[0].mxu0 %v407
    %v660 = vpop.f32.mrb[0].mxu0
    %v661 = vadd.f32 %v331, %v660
    %v662 = vpop.f32.mrb[0].mxu0
    %v663 = vpop.f32.mrb[0].mxu0
    %v664 = vadd.f32 %v331, %v663
    %v665 = vpop.f32.mrb[0].mxu0
    %666 = vmatprep.mubr.bf16.mxu0 0
    %667 = vmatmul.mubr.bf16.gmra.mrb[0].mxu0 %v410
    %v668 = vpop.f32.mrb[0].mxu0
    %v669 = vadd.f32 %v331, %v668
    %v670 = vpop.f32.mrb[0].mxu0
    %v671 = vpop.f32.mrb[0].mxu0
    %v672 = vadd.f32 %v331, %v671
    %v673 = vpop.f32.mrb[0].mxu0
    %674 = vmatprep.mubr.bf16.mxu0 0
    %675 = vmatmul.mubr.bf16.gmra.mrb[0].mxu0 %v413
    %v676 = vpop.f32.mrb[0].mxu0
    %v677 = vadd.f32 %v331, %v676
    %v678 = vpop.f32.mrb[0].mxu0
    %v679 = vpop.f32.mrb[0].mxu0
    %v680 = vadd.f32 %v331, %v679
    %v681 = vpop.f32.mrb[0].mxu0
    %682 = vmatprep.mubr.bf16.mxu0 0
    %683 = vmatmul.mubr.bf16.gmra.mrb[0].mxu0 %v416
    %v684 = vpop.f32.mrb[0].mxu0
    %v685 = vadd.f32 %v331, %v684
    %v686 = vpop.f32.mrb[0].mxu0
    %v687 = vpop.f32.mrb[0].mxu0
    %v688 = vadd.f32 %v331, %v687
    %v689 = vpop.f32.mrb[0].mxu0
    %690 = vmatprep.mubr.bf16.mxu0 0
    %691 = vmatmul.mubr.bf16.gmra.mrb[0].mxu0 %v419
    %v692 = vpop.f32.mrb[0].mxu0
    %v693 = vadd.f32 %v331, %v692
    %v694 = vpop.f32.mrb[0].mxu0
    %v695 = vpop.f32.mrb[0].mxu0
    %v696 = vadd.f32 %v331, %v695
    %v697 = vpop.f32.mrb[0].mxu0
    %698 = vmatprep.mubr.bf16.mxu0 0
    %699 = vmatmul.mubr.bf16.gmra.mrb[0].mxu0 %v422
    %v700 = vpop.f32.mrb[0].mxu0
    %v701 = vadd.f32 %v331, %v700
    %v702 = vpop.f32.mrb[0].mxu0
    %v703 = vpop.f32.mrb[0].mxu0
    %v704 = vadd.f32 %v331, %v703
    %v705 = vpop.f32.mrb[0].mxu0
    %706 = vmatprep.mubr.bf16.mxu0 0
    %707 = vmatmul.mubr.bf16.gmra.mrb[0].mxu0 %v425
    %v708 = vpop.f32.mrb[0].mxu0
    %v709 = vadd.f32 %v331, %v708
    %v710 = vpop.f32.mrb[0].mxu0
    %v711 = vpop.f32.mrb[0].mxu0
    %v712 = vadd.f32 %v331, %v711
    %v713 = vpop.f32.mrb[0].mxu0
    %714 = vmatprep.mubr.bf16.mxu0 0
    %715 = vmatmul.mubr.bf16.gmra.mrb[0].mxu0 %v428
    %v716 = vpop.f32.mrb[0].mxu0
    %v717 = vadd.f32 %v331, %v716
    %v718 = vpop.f32.mrb[0].mxu0
    %v719 = vpop.f32.mrb[0].mxu0
    %v720 = vadd.f32 %v331, %v719
    %v721 = vpop.f32.mrb[0].mxu0
    %722 = vdwg.mxu0
    %v723 = vmax.f32 %v469, 0.0
    %v724 = vmax.f32 %v472, 0.0
    %v725 = vmax.f32 %v477, 0.0
    %v726 = vmax.f32 %v480, 0.0
    %v727 = vmax.f32 %v485, 0.0
    %v728 = vmax.f32 %v488, 0.0
    %v729 = vmax.f32 %v493, 0.0
    %v730 = vmax.f32 %v496, 0.0
    %v731 = vmax.f32 %v501, 0.0
    %v732 = vmax.f32 %v504, 0.0
    %v733 = vmax.f32 %v509, 0.0
    %v734 = vmax.f32 %v512, 0.0
    %v735 = vmax.f32 %v517, 0.0
    %v736 = vmax.f32 %v520, 0.0
    %v737 = vmax.f32 %v525, 0.0
    %v738 = vmax.f32 %v528, 0.0
    %v739 = vmax.f32 %v533, 0.0
    %v740 = vmax.f32 %v536, 0.0
    %v741 = vmax.f32 %v541, 0.0
    %v742 = vmax.f32 %v544, 0.0
    %v743 = vmax.f32 %v549, 0.0
    %v744 = vmax.f32 %v552, 0.0
    %v745 = vmax.f32 %v557, 0.0
    %v746 = vmax.f32 %v560, 0.0
    %v747 = vmax.f32 %v565, 0.0
    %v748 = vmax.f32 %v568, 0.0
    %v749 = vmax.f32 %v573, 0.0
    %v750 = vmax.f32 %v576, 0.0
    %v751 = vmax.f32 %v581, 0.0
    %v752 = vmax.f32 %v584, 0.0
    %v753 = vmax.f32 %v589, 0.0
    %v754 = vmax.f32 %v592, 0.0
    %v755 = vmax.f32 %v597, 0.0
    %v756 = vmax.f32 %v600, 0.0
    %v757 = vmax.f32 %v605, 0.0
    %v758 = vmax.f32 %v608, 0.0
    %v759 = vmax.f32 %v613, 0.0
    %v760 = vmax.f32 %v616, 0.0
    %v761 = vmax.f32 %v621, 0.0
    %v762 = vmax.f32 %v624, 0.0
    %v763 = vmax.f32 %v629, 0.0
    %v764 = vmax.f32 %v632, 0.0
    %v765 = vmax.f32 %v637, 0.0
    %v766 = vmax.f32 %v640, 0.0
    %v767 = vmax.f32 %v645, 0.0
    %v768 = vmax.f32 %v648, 0.0
    %v769 = vmax.f32 %v653, 0.0
    %v770 = vmax.f32 %v656, 0.0
    %v771 = vmax.f32 %v661, 0.0
    %v772 = vmax.f32 %v664, 0.0
    %v773 = vmax.f32 %v669, 0.0
    %v774 = vmax.f32 %v672, 0.0
    %v775 = vmax.f32 %v677, 0.0
    %v776 = vmax.f32 %v680, 0.0
    %v777 = vmax.f32 %v685, 0.0
    %v778 = vmax.f32 %v688, 0.0
    %v779 = vmax.f32 %v693, 0.0
    %v780 = vmax.f32 %v696, 0.0
    %v781 = vmax.f32 %v701, 0.0
    %v782 = vmax.f32 %v704, 0.0
    %v783 = vmax.f32 %v709, 0.0
    %v784 = vmax.f32 %v712, 0.0
    %v785 = vmax.f32 %v717, 0.0
    %v786 = vmax.f32 %v720, 0.0
    %v787 = vpack.c.bf16 %v724, %v723
    %v788 = vpack.c.bf16 %v726, %v725
    %v789 = vpack.c.bf16 %v728, %v727
    %v790 = vpack.c.bf16 %v730, %v729
    %v791 = vpack.c.bf16 %v732, %v731
    %v792 = vpack.c.bf16 %v734, %v733
    %v793 = vpack.c.bf16 %v736, %v735
    %v794 = vpack.c.bf16 %v738, %v737
    %v795 = vpack.c.bf16 %v740, %v739
    %v796 = vpack.c.bf16 %v742, %v741
    %v797 = vpack.c.bf16 %v744, %v743
    %v798 = vpack.c.bf16 %v746, %v745
    %v799 = vpack.c.bf16 %v748, %v747
    %v800 = vpack.c.bf16 %v750, %v749
    %v801 = vpack.c.bf16 %v752, %v751
    %v802 = vpack.c.bf16 %v754, %v753
    %v803 = vpack.c.bf16 %v756, %v755
    %v804 = vpack.c.bf16 %v758, %v757
    %v805 = vpack.c.bf16 %v760, %v759
    %v806 = vpack.c.bf16 %v762, %v761
    %v807 = vpack.c.bf16 %v764, %v763
    %v808 = vpack.c.bf16 %v766, %v765
    %v809 = vpack.c.bf16 %v768, %v767
    %v810 = vpack.c.bf16 %v770, %v769
    %v811 = vpack.c.bf16 %v772, %v771
    %v812 = vpack.c.bf16 %v774, %v773
    %v813 = vpack.c.bf16 %v776, %v775
    %v814 = vpack.c.bf16 %v778, %v777
    %v815 = vpack.c.bf16 %v780, %v779
    %v816 = vpack.c.bf16 %v782, %v781
    %v817 = vpack.c.bf16 %v784, %v783
    %v818 = vpack.c.bf16 %v786, %v785
    %v819 = vld [vmem:[#allocation10] sm:$0xf]
    %v820 = vld [vmem:[#allocation10 + $0x4] sm:$0xf]
    %v821 = vld [vmem:[#allocation11] sm:$0x1]
    %v823 = vlaneseq
    %v824 = vshrl.u32 %v823, 7
    %v825 = vsub.s32 0, %v824
    %v826 = vrot.slane %v821, %v825
    %v830 = vunpack.c.l.b16 %v819
    %v831 = vunpack.c.l.b16 %v820
    %v832 = vpack.c.b16 %v831, %v830
    %vm834 = vcmask 130048
    %v836 = vsel %vm834, %v787, 0
    %v839 = vsel %vm834, %v788, 0
    %v842 = vsel %vm834, %v789, 0
    %v845 = vsel %vm834, %v790, 0
    %v848 = vsel %vm834, %v791, 0
    %v851 = vsel %vm834, %v792, 0
    %v854 = vsel %vm834, %v793, 0
    %v857 = vsel %vm834, %v794, 0
    %v860 = vsel %vm834, %v795, 0
    %v863 = vsel %vm834, %v796, 0
    %v866 = vsel %vm834, %v797, 0
    %v869 = vsel %vm834, %v798, 0
    %v872 = vsel %vm834, %v799, 0
    %v875 = vsel %vm834, %v800, 0
    %v878 = vsel %vm834, %v801, 0
    %v881 = vsel %vm834, %v802, 0
    %v884 = vsel %vm834, %v803, 0
    %v887 = vsel %vm834, %v804, 0
    %v890 = vsel %vm834, %v805, 0
    %v893 = vsel %vm834, %v806, 0
    %v896 = vsel %vm834, %v807, 0
    %v899 = vsel %vm834, %v808, 0
    %v902 = vsel %vm834, %v809, 0
    %v905 = vsel %vm834, %v810, 0
    %v908 = vsel %vm834, %v811, 0
    %v911 = vsel %vm834, %v812, 0
    %v914 = vsel %vm834, %v813, 0
    %v917 = vsel %vm834, %v814, 0
    %v920 = vsel %vm834, %v815, 0
    %v923 = vsel %vm834, %v816, 0
    %v926 = vsel %vm834, %v817, 0
    %v929 = vsel %vm834, %v818, 0
    %931 = vmatprep.subr.bf16.mxu0 0
    %932 = vmatpush1.bf16.msra.mxu0 %v832
    %933 = vmatprep.subr.bf16.mxu0 0
    %934 = vmatpush1.bf16.msra.mxu0 0
    %935 = vmatprep.subr.bf16.mxu0 0
    %936 = vmatpush1.bf16.msra.mxu0 0
    %937 = vmatprep.subr.bf16.mxu0 0
    %938 = vmatpush1.bf16.msra.mxu0 0
    %939 = vmatprep.subr.bf16.mxu0 0
    %940 = vmatpush1.bf16.msra.mxu0 0
    %941 = vmatprep.subr.bf16.mxu0 0
    %942 = vmatpush1.bf16.msra.mxu0 0
    %943 = vmatprep.subr.bf16.mxu0 0
    %944 = vmatpush1.bf16.msra.mxu0 0
    %945 = vmatprep.subr.bf16.mxu0 0
    %946 = vmatpush1.bf16.msra.mxu0 0
    %947 = vmatprep.subr.bf16.mxu0 0
    %948 = vmatpush1.bf16.msra.mxu0 0
    %949 = vmatprep.subr.bf16.mxu0 0
    %950 = vmatpush1.bf16.msra.mxu0 0
    %951 = vmatprep.subr.bf16.mxu0 0
    %952 = vmatpush1.bf16.msra.mxu0 0
    %953 = vmatprep.subr.bf16.mxu0 0
    %954 = vmatpush1.bf16.msra.mxu0 0
    %955 = vmatprep.subr.bf16.mxu0 0
    %956 = vmatpush1.bf16.msra.mxu0 0
    %957 = vmatprep.subr.bf16.mxu0 0
    %958 = vmatpush1.bf16.msra.mxu0 0
    %959 = vmatprep.subr.bf16.mxu0 0
    %960 = vmatpush1.bf16.msra.mxu0 0
    %961 = vmatprep.subr.bf16.mxu0 0
    %962 = vmatpush1.bf16.msra.mxu0 0
    %963 = vmatprep.mubr.bf16.mxu0 0
    %964 = vmatmul.mubr.bf16.gmra.mrb[0].mxu0 %v836
    %v965 = vpop.f32.mrb[0].mxu0
    %v966 = vadd.f32 %v826, %v965
    %v967 = vpop.f32.mrb[0].mxu0
    %v968 = vpop.f32.mrb[0].mxu0
    %v969 = vadd.f32 %v826, %v968
    %v970 = vpop.f32.mrb[0].mxu0
    %971 = vmatprep.mubr.bf16.mxu0 0
    %972 = vmatmul.mubr.bf16.gmra.mrb[0].mxu0 %v839
    %v973 = vpop.f32.mrb[0].mxu0
    %v974 = vadd.f32 %v826, %v973
    %v975 = vpop.f32.mrb[0].mxu0
    %v976 = vpop.f32.mrb[0].mxu0
    %v977 = vadd.f32 %v826, %v976
    %v978 = vpop.f32.mrb[0].mxu0
    %979 = vmatprep.mubr.bf16.mxu0 0
    %980 = vmatmul.mubr.bf16.gmra.mrb[0].mxu0 %v842
    %v981 = vpop.f32.mrb[0].mxu0
    %v982 = vadd.f32 %v826, %v981
    %v983 = vpop.f32.mrb[0].mxu0
    %v984 = vpop.f32.mrb[0].mxu0
    %v985 = vadd.f32 %v826, %v984
    %v986 = vpop.f32.mrb[0].mxu0
    %987 = vmatprep.mubr.bf16.mxu0 0
    %988 = vmatmul.mubr.bf16.gmra.mrb[0].mxu0 %v845
    %v989 = vpop.f32.mrb[0].mxu0
    %v990 = vadd.f32 %v826, %v989
    %v991 = vpop.f32.mrb[0].mxu0
    %v992 = vpop.f32.mrb[0].mxu0
    %v993 = vadd.f32 %v826, %v992
    %v994 = vpop.f32.mrb[0].mxu0
    %995 = vmatprep.mubr.bf16.mxu0 0
    %996 = vmatmul.mubr.bf16.gmra.mrb[0].mxu0 %v848
    %v997 = vpop.f32.mrb[0].mxu0
    %v998 = vadd.f32 %v826, %v997
    %v999 = vpop.f32.mrb[0].mxu0
    %v1000 = vpop.f32.mrb[0].mxu0
    %v1001 = vadd.f32 %v826, %v1000
    %v1002 = vpop.f32.mrb[0].mxu0
    %1003 = vmatprep.mubr.bf16.mxu0 0
    %1004 = vmatmul.mubr.bf16.gmra.mrb[0].mxu0 %v851
    %v1005 = vpop.f32.mrb[0].mxu0
    %v1006 = vadd.f32 %v826, %v1005
    %v1007 = vpop.f32.mrb[0].mxu0
    %v1008 = vpop.f32.mrb[0].mxu0
    %v1009 = vadd.f32 %v826, %v1008
    %v1010 = vpop.f32.mrb[0].mxu0
    %1011 = vmatprep.mubr.bf16.mxu0 0
    %1012 = vmatmul.mubr.bf16.gmra.mrb[0].mxu0 %v854
    %v1013 = vpop.f32.mrb[0].mxu0
    %v1014 = vadd.f32 %v826, %v1013
    %v1015 = vpop.f32.mrb[0].mxu0
    %v1016 = vpop.f32.mrb[0].mxu0
    %v1017 = vadd.f32 %v826, %v1016
    %v1018 = vpop.f32.mrb[0].mxu0
    %1019 = vmatprep.mubr.bf16.mxu0 0
    %1020 = vmatmul.mubr.bf16.gmra.mrb[0].mxu0 %v857
    %v1021 = vpop.f32.mrb[0].mxu0
    %v1022 = vadd.f32 %v826, %v1021
    %v1023 = vpop.f32.mrb[0].mxu0
    %v1024 = vpop.f32.mrb[0].mxu0
    %v1025 = vadd.f32 %v826, %v1024
    %v1026 = vpop.f32.mrb[0].mxu0
    %1027 = vmatprep.mubr.bf16.mxu0 0
    %1028 = vmatmul.mubr.bf16.gmra.mrb[0].mxu0 %v860
    %v1029 = vpop.f32.mrb[0].mxu0
    %v1030 = vadd.f32 %v826, %v1029
    %v1031 = vpop.f32.mrb[0].mxu0
    %v1032 = vpop.f32.mrb[0].mxu0
    %v1033 = vadd.f32 %v826, %v1032
    %v1034 = vpop.f32.mrb[0].mxu0
    %1035 = vmatprep.mubr.bf16.mxu0 0
    %1036 = vmatmul.mubr.bf16.gmra.mrb[0].mxu0 %v863
    %v1037 = vpop.f32.mrb[0].mxu0
    %v1038 = vadd.f32 %v826, %v1037
    %v1039 = vpop.f32.mrb[0].mxu0
    %v1040 = vpop.f32.mrb[0].mxu0
    %v1041 = vadd.f32 %v826, %v1040
    %v1042 = vpop.f32.mrb[0].mxu0
    %1043 = vmatprep.mubr.bf16.mxu0 0
    %1044 = vmatmul.mubr.bf16.gmra.mrb[0].mxu0 %v866
    %v1045 = vpop.f32.mrb[0].mxu0
    %v1046 = vadd.f32 %v826, %v1045
    %v1047 = vpop.f32.mrb[0].mxu0
    %v1048 = vpop.f32.mrb[0].mxu0
    %v1049 = vadd.f32 %v826, %v1048
    %v1050 = vpop.f32.mrb[0].mxu0
    %1051 = vmatprep.mubr.bf16.mxu0 0
    %1052 = vmatmul.mubr.bf16.gmra.mrb[0].mxu0 %v869
    %v1053 = vpop.f32.mrb[0].mxu0
    %v1054 = vadd.f32 %v826, %v1053
    %v1055 = vpop.f32.mrb[0].mxu0
    %v1056 = vpop.f32.mrb[0].mxu0
    %v1057 = vadd.f32 %v826, %v1056
    %v1058 = vpop.f32.mrb[0].mxu0
    %1059 = vmatprep.mubr.bf16.mxu0 0
    %1060 = vmatmul.mubr.bf16.gmra.mrb[0].mxu0 %v872
    %v1061 = vpop.f32.mrb[0].mxu0
    %v1062 = vadd.f32 %v826, %v1061
    %v1063 = vpop.f32.mrb[0].mxu0
    %v1064 = vpop.f32.mrb[0].mxu0
    %v1065 = vadd.f32 %v826, %v1064
    %v1066 = vpop.f32.mrb[0].mxu0
    %1067 = vmatprep.mubr.bf16.mxu0 0
    %1068 = vmatmul.mubr.bf16.gmra.mrb[0].mxu0 %v875
    %v1069 = vpop.f32.mrb[0].mxu0
    %v1070 = vadd.f32 %v826, %v1069
    %v1071 = vpop.f32.mrb[0].mxu0
    %v1072 = vpop.f32.mrb[0].mxu0
    %v1073 = vadd.f32 %v826, %v1072
    %v1074 = vpop.f32.mrb[0].mxu0
    %1075 = vmatprep.mubr.bf16.mxu0 0
    %1076 = vmatmul.mubr.bf16.gmra.mrb[0].mxu0 %v878
    %v1077 = vpop.f32.mrb[0].mxu0
    %v1078 = vadd.f32 %v826, %v1077
    %v1079 = vpop.f32.mrb[0].mxu0
    %v1080 = vpop.f32.mrb[0].mxu0
    %v1081 = vadd.f32 %v826, %v1080
    %v1082 = vpop.f32.mrb[0].mxu0
    %1083 = vmatprep.mubr.bf16.mxu0 0
    %1084 = vmatmul.mubr.bf16.gmra.mrb[0].mxu0 %v881
    %v1085 = vpop.f32.mrb[0].mxu0
    %v1086 = vadd.f32 %v826, %v1085
    %v1087 = vpop.f32.mrb[0].mxu0
    %v1088 = vpop.f32.mrb[0].mxu0
    %v1089 = vadd.f32 %v826, %v1088
    %v1090 = vpop.f32.mrb[0].mxu0
    %1091 = vmatprep.mubr.bf16.mxu0 0
    %1092 = vmatmul.mubr.bf16.gmra.mrb[0].mxu0 %v884
    %v1093 = vpop.f32.mrb[0].mxu0
    %v1094 = vadd.f32 %v826, %v1093
    %v1095 = vpop.f32.mrb[0].mxu0
    %v1096 = vpop.f32.mrb[0].mxu0
    %v1097 = vadd.f32 %v826, %v1096
    %v1098 = vpop.f32.mrb[0].mxu0
    %1099 = vmatprep.mubr.bf16.mxu0 0
    %1100 = vmatmul.mubr.bf16.gmra.mrb[0].mxu0 %v887
    %v1101 = vpop.f32.mrb[0].mxu0
    %v1102 = vadd.f32 %v826, %v1101
    %v1103 = vpop.f32.mrb[0].mxu0
    %v1104 = vpop.f32.mrb[0].mxu0
    %v1105 = vadd.f32 %v826, %v1104
    %v1106 = vpop.f32.mrb[0].mxu0
    %1107 = vmatprep.mubr.bf16.mxu0 0
    %1108 = vmatmul.mubr.bf16.gmra.mrb[0].mxu0 %v890
    %v1109 = vpop.f32.mrb[0].mxu0
    %v1110 = vadd.f32 %v826, %v1109
    %v1111 = vpop.f32.mrb[0].mxu0
    %v1112 = vpop.f32.mrb[0].mxu0
    %v1113 = vadd.f32 %v826, %v1112
    %v1114 = vpop.f32.mrb[0].mxu0
    %1115 = vmatprep.mubr.bf16.mxu0 0
    %1116 = vmatmul.mubr.bf16.gmra.mrb[0].mxu0 %v893
    %v1117 = vpop.f32.mrb[0].mxu0
    %v1118 = vadd.f32 %v826, %v1117
    %v1119 = vpop.f32.mrb[0].mxu0
    %v1120 = vpop.f32.mrb[0].mxu0
    %v1121 = vadd.f32 %v826, %v1120
    %v1122 = vpop.f32.mrb[0].mxu0
    %1123 = vmatprep.mubr.bf16.mxu0 0
    %1124 = vmatmul.mubr.bf16.gmra.mrb[0].mxu0 %v896
    %v1125 = vpop.f32.mrb[0].mxu0
    %v1126 = vadd.f32 %v826, %v1125
    %v1127 = vpop.f32.mrb[0].mxu0
    %v1128 = vpop.f32.mrb[0].mxu0
    %v1129 = vadd.f32 %v826, %v1128
    %v1130 = vpop.f32.mrb[0].mxu0
    %1131 = vmatprep.mubr.bf16.mxu0 0
    %1132 = vmatmul.mubr.bf16.gmra.mrb[0].mxu0 %v899
    %v1133 = vpop.f32.mrb[0].mxu0
    %v1134 = vadd.f32 %v826, %v1133
    %v1135 = vpop.f32.mrb[0].mxu0
    %v1136 = vpop.f32.mrb[0].mxu0
    %v1137 = vadd.f32 %v826, %v1136
    %v1138 = vpop.f32.mrb[0].mxu0
    %1139 = vmatprep.mubr.bf16.mxu0 0
    %1140 = vmatmul.mubr.bf16.gmra.mrb[0].mxu0 %v902
    %v1141 = vpop.f32.mrb[0].mxu0
    %v1142 = vadd.f32 %v826, %v1141
    %v1143 = vpop.f32.mrb[0].mxu0
    %v1144 = vpop.f32.mrb[0].mxu0
    %v1145 = vadd.f32 %v826, %v1144
    %v1146 = vpop.f32.mrb[0].mxu0
    %1147 = vmatprep.mubr.bf16.mxu0 0
    %1148 = vmatmul.mubr.bf16.gmra.mrb[0].mxu0 %v905
    %v1149 = vpop.f32.mrb[0].mxu0
    %v1150 = vadd.f32 %v826, %v1149
    %v1151 = vpop.f32.mrb[0].mxu0
    %v1152 = vpop.f32.mrb[0].mxu0
    %v1153 = vadd.f32 %v826, %v1152
    %v1154 = vpop.f32.mrb[0].mxu0
    %1155 = vmatprep.mubr.bf16.mxu0 0
    %1156 = vmatmul.mubr.bf16.gmra.mrb[0].mxu0 %v908
    %v1157 = vpop.f32.mrb[0].mxu0
    %v1158 = vadd.f32 %v826, %v1157
    %v1159 = vpop.f32.mrb[0].mxu0
    %v1160 = vpop.f32.mrb[0].mxu0
    %v1161 = vadd.f32 %v826, %v1160
    %v1162 = vpop.f32.mrb[0].mxu0
    %1163 = vmatprep.mubr.bf16.mxu0 0
    %1164 = vmatmul.mubr.bf16.gmra.mrb[0].mxu0 %v911
    %v1165 = vpop.f32.mrb[0].mxu0
    %v1166 = vadd.f32 %v826, %v1165
    %v1167 = vpop.f32.mrb[0].mxu0
    %v1168 = vpop.f32.mrb[0].mxu0
    %v1169 = vadd.f32 %v826, %v1168
    %v1170 = vpop.f32.mrb[0].mxu0
    %1171 = vmatprep.mubr.bf16.mxu0 0
    %1172 = vmatmul.mubr.bf16.gmra.mrb[0].mxu0 %v914
    %v1173 = vpop.f32.mrb[0].mxu0
    %v1174 = vadd.f32 %v826, %v1173
    %v1175 = vpop.f32.mrb[0].mxu0
    %v1176 = vpop.f32.mrb[0].mxu0
    %v1177 = vadd.f32 %v826, %v1176
    %v1178 = vpop.f32.mrb[0].mxu0
    %1179 = vmatprep.mubr.bf16.mxu0 0
    %1180 = vmatmul.mubr.bf16.gmra.mrb[0].mxu0 %v917
    %v1181 = vpop.f32.mrb[0].mxu0
    %v1182 = vadd.f32 %v826, %v1181
    %v1183 = vpop.f32.mrb[0].mxu0
    %v1184 = vpop.f32.mrb[0].mxu0
    %v1185 = vadd.f32 %v826, %v1184
    %v1186 = vpop.f32.mrb[0].mxu0
    %1187 = vmatprep.mubr.bf16.mxu0 0
    %1188 = vmatmul.mubr.bf16.gmra.mrb[0].mxu0 %v920
    %v1189 = vpop.f32.mrb[0].mxu0
    %v1190 = vadd.f32 %v826, %v1189
    %v1191 = vpop.f32.mrb[0].mxu0
    %v1192 = vpop.f32.mrb[0].mxu0
    %v1193 = vadd.f32 %v826, %v1192
    %v1194 = vpop.f32.mrb[0].mxu0
    %1195 = vmatprep.mubr.bf16.mxu0 0
    %1196 = vmatmul.mubr.bf16.gmra.mrb[0].mxu0 %v923
    %v1197 = vpop.f32.mrb[0].mxu0
    %v1198 = vadd.f32 %v826, %v1197
    %v1199 = vpop.f32.mrb[0].mxu0
    %v1200 = vpop.f32.mrb[0].mxu0
    %v1201 = vadd.f32 %v826, %v1200
    %v1202 = vpop.f32.mrb[0].mxu0
    %1203 = vmatprep.mubr.bf16.mxu0 0
    %1204 = vmatmul.mubr.bf16.gmra.mrb[0].mxu0 %v926
    %v1205 = vpop.f32.mrb[0].mxu0
    %v1206 = vadd.f32 %v826, %v1205
    %v1207 = vpop.f32.mrb[0].mxu0
    %v1208 = vpop.f32.mrb[0].mxu0
    %v1209 = vadd.f32 %v826, %v1208
    %v1210 = vpop.f32.mrb[0].mxu0
    %1211 = vmatprep.mubr.bf16.mxu0 0
    %1212 = vmatmul.mubr.bf16.gmra.mrb[0].mxu0 %v929
    %v1213 = vpop.f32.mrb[0].mxu0
    %v1214 = vadd.f32 %v826, %v1213
    %v1215 = vpop.f32.mrb[0].mxu0
    %v1216 = vpop.f32.mrb[0].mxu0
    %v1217 = vadd.f32 %v826, %v1216
    %v1218 = vpop.f32.mrb[0].mxu0
    %1219 = vdwg.mxu0
    %1220 = vst.msk [vmem:[#allocation13] sm:$0xff] %vm333, %v966
    %1221 = vst.msk [vmem:[#allocation13 + $0x8] sm:$0xff] %vm333, %v969
    %1222 = vst.msk [vmem:[#allocation13 + $0x10] sm:$0xff] %vm333, %v974
    %1223 = vst.msk [vmem:[#allocation13 + $0x18] sm:$0xff] %vm333, %v977
    %1224 = vst.msk [vmem:[#allocation13 + $0x20] sm:$0xff] %vm333, %v982
    %1225 = vst.msk [vmem:[#allocation13 + $0x28] sm:$0xff] %vm333, %v985
    %1226 = vst.msk [vmem:[#allocation13 + $0x30] sm:$0xff] %vm333, %v990
    %1227 = vst.msk [vmem:[#allocation13 + $0x38] sm:$0xff] %vm333, %v993
    %1228 = vst.msk [vmem:[#allocation13 + $0x40] sm:$0xff] %vm333, %v998
    %1229 = vst.msk [vmem:[#allocation13 + $0x48] sm:$0xff] %vm333, %v1001
    %1230 = vst.msk [vmem:[#allocation13 + $0x50] sm:$0xff] %vm333, %v1006
    %1231 = vst.msk [vmem:[#allocation13 + $0x58] sm:$0xff] %vm333, %v1009
    %1232 = vst.msk [vmem:[#allocation13 + $0x60] sm:$0xff] %vm333, %v1014
    %1233 = vst.msk [vmem:[#allocation13 + $0x68] sm:$0xff] %vm333, %v1017
    %1234 = vst.msk [vmem:[#allocation13 + $0x70] sm:$0xff] %vm333, %v1022
    %1235 = vst.msk [vmem:[#allocation13 + $0x78] sm:$0xff] %vm333, %v1025
    %1236 = vst.msk [vmem:[#allocation13 + $0x80] sm:$0xff] %vm333, %v1030
    %1237 = vst.msk [vmem:[#allocation13 + $0x88] sm:$0xff] %vm333, %v1033
    %1238 = vst.msk [vmem:[#allocation13 + $0x90] sm:$0xff] %vm333, %v1038
    %1239 = vst.msk [vmem:[#allocation13 + $0x98] sm:$0xff] %vm333, %v1041
    %1240 = vst.msk [vmem:[#allocation13 + $0xa0] sm:$0xff] %vm333, %v1046
    %1241 = vst.msk [vmem:[#allocation13 + $0xa8] sm:$0xff] %vm333, %v1049
    %1242 = vst.msk [vmem:[#allocation13 + $0xb0] sm:$0xff] %vm333, %v1054
    %1243 = vst.msk [vmem:[#allocation13 + $0xb8] sm:$0xff] %vm333, %v1057
    %1244 = vst.msk [vmem:[#allocation13 + $0xc0] sm:$0xff] %vm333, %v1062
    %1245 = vst.msk [vmem:[#allocation13 + $0xc8] sm:$0xff] %vm333, %v1065
    %1246 = vst.msk [vmem:[#allocation13 + $0xd0] sm:$0xff] %vm333, %v1070
    %1247 = vst.msk [vmem:[#allocation13 + $0xd8] sm:$0xff] %vm333, %v1073
    %1248 = vst.msk [vmem:[#allocation13 + $0xe0] sm:$0xff] %vm333, %v1078
    %1249 = vst.msk [vmem:[#allocation13 + $0xe8] sm:$0xff] %vm333, %v1081
    %1250 = vst.msk [vmem:[#allocation13 + $0xf0] sm:$0xff] %vm333, %v1086
    %1251 = vst.msk [vmem:[#allocation13 + $0xf8] sm:$0xff] %vm333, %v1089
    %1252 = vst.msk [vmem:[#allocation13 + $0x100] sm:$0xff] %vm333, %v1094
    %1253 = vst.msk [vmem:[#allocation13 + $0x108] sm:$0xff] %vm333, %v1097
    %1254 = vst.msk [vmem:[#allocation13 + $0x110] sm:$0xff] %vm333, %v1102
    %1255 = vst.msk [vmem:[#allocation13 + $0x118] sm:$0xff] %vm333, %v1105
    %1256 = vst.msk [vmem:[#allocation13 + $0x120] sm:$0xff] %vm333, %v1110
    %1257 = vst.msk [vmem:[#allocation13 + $0x128] sm:$0xff] %vm333, %v1113
    %1258 = vst.msk [vmem:[#allocation13 + $0x130] sm:$0xff] %vm333, %v1118
    %1259 = vst.msk [vmem:[#allocation13 + $0x138] sm:$0xff] %vm333, %v1121
    %1260 = vst.msk [vmem:[#allocation13 + $0x140] sm:$0xff] %vm333, %v1126
    %1261 = vst.msk [vmem:[#allocation13 + $0x148] sm:$0xff] %vm333, %v1129
    %1262 = vst.msk [vmem:[#allocation13 + $0x150] sm:$0xff] %vm333, %v1134
    %1263 = vst.msk [vmem:[#allocation13 + $0x158] sm:$0xff] %vm333, %v1137
    %1264 = vst.msk [vmem:[#allocation13 + $0x160] sm:$0xff] %vm333, %v1142
    %1265 = vst.msk [vmem:[#allocation13 + $0x168] sm:$0xff] %vm333, %v1145
    %1266 = vst.msk [vmem:[#allocation13 + $0x170] sm:$0xff] %vm333, %v1150
    %1267 = vst.msk [vmem:[#allocation13 + $0x178] sm:$0xff] %vm333, %v1153
    %1268 = vst.msk [vmem:[#allocation13 + $0x180] sm:$0xff] %vm333, %v1158
    %1269 = vst.msk [vmem:[#allocation13 + $0x188] sm:$0xff] %vm333, %v1161
    %1270 = vst.msk [vmem:[#allocation13 + $0x190] sm:$0xff] %vm333, %v1166
    %1271 = vst.msk [vmem:[#allocation13 + $0x198] sm:$0xff] %vm333, %v1169
    %1272 = vst.msk [vmem:[#allocation13 + $0x1a0] sm:$0xff] %vm333, %v1174
    %1273 = vst.msk [vmem:[#allocation13 + $0x1a8] sm:$0xff] %vm333, %v1177
    %1274 = vst.msk [vmem:[#allocation13 + $0x1b0] sm:$0xff] %vm333, %v1182
    %1275 = vst.msk [vmem:[#allocation13 + $0x1b8] sm:$0xff] %vm333, %v1185
    %1276 = vst.msk [vmem:[#allocation13 + $0x1c0] sm:$0xff] %vm333, %v1190
    %1277 = vst.msk [vmem:[#allocation13 + $0x1c8] sm:$0xff] %vm333, %v1193
    %1278 = vst.msk [vmem:[#allocation13 + $0x1d0] sm:$0xff] %vm333, %v1198
    %1279 = vst.msk [vmem:[#allocation13 + $0x1d8] sm:$0xff] %vm333, %v1201
    %1280 = vst.msk [vmem:[#allocation13 + $0x1e0] sm:$0xff] %vm333, %v1206
    %1281 = vst.msk [vmem:[#allocation13 + $0x1e8] sm:$0xff] %vm333, %v1209
    %1282 = vst.msk [vmem:[#allocation13 + $0x1f0] sm:$0xff] %vm333, %v1214
    %1283 = vst.msk [vmem:[#allocation13 + $0x1f8] sm:$0xff] %vm333, %v1217
    // Predicated region
    $region50: #{spectral_conv2d_forward.5} parent=1 // pred_check
      _
    $region51: #{spectral_conv2d_forward.5} parent=1 // pred_check_branch
      %1285 = sbr.rel (0) target = $region53
    $region52: #{spectral_conv2d_forward.5} parent=1 // pred_region
      %s1287 = ssub.s32 8192, 8192
      %1288 = vsyncadd [#allocation4], %s1287
      %s1289 = sshll.u32 [#allocation13], 4
      %s1290 = int_to_ptr.vmem [resolvable:$true] %s1289
      %1295 = dma.vmem_to_hbm [thread:$0]  %s1290, 8192, %s6, [#allocation4], 128, 128, 8
    $region53: #{spectral_conv2d_forward.5} parent=1 // pred_fallthru
      _
    // Predicated region
    $region54: #{spectral_conv2d_forward.5} parent=1 // pred_check
      _
    $region55: #{spectral_conv2d_forward.5} parent=1 // pred_check_branch
      %1297 = sbr.rel (0) target = $region57
    $region56: #{spectral_conv2d_forward.5} parent=1 // pred_region
      %1298 = dma.done [#allocation4], 8192
    $region57: #{spectral_conv2d_forward.5} parent=1 // pred_fallthru
      _
    %1299 = vsyncpa [#allocation3], 1
    %1300 = vsyncpa [#allocation6], 1
    %1301 = vsyncpa [#allocation9], 1
    %1302 = vsyncpa [#allocation12], 1
    %1303 = vsyncpa [#allocation4], 1

</llo_original>
